<compile_context>
chip_gen: v5e
topology: v5e:2x2
jax: 0.10.0
libtpu: 0.0.40
codegen_flags: <defaults>
</compile_context>

<pallas_src>
import jax
import jax.numpy as jnp
from jax.experimental import pallas as pl
from jax.experimental.pallas import tpu as pltpu


# ----------------------------- Pallas kernel ------------------------------ #
def _disc_mlp_kernel(x_ref, lbl_ref, lbias_ref, w1_ref, w2_ref, b2_ref,
                     w3_ref, b3_ref, w4_ref, b4_ref, out_ref):
    """Linear->LReLU->Linear->(drop)->LReLU->Linear->(drop)->LReLU->head."""
    neg_slope = jnp.float32(0.2)

    def lrelu(h):
        return jnp.where(h > 0, h, neg_slope * h)

    # Layer 1, image path: f32 rows cast to bf16 on the VPU, MXU-aligned K.
    x = x_ref[...].astype(jnp.bfloat16)                           # (TB, Kp)
    h = jnp.dot(x, w1_ref[...], preferred_element_type=jnp.float32)

    # Layer 1, label path: one-hot(labels) @ label_bias  (tiny K=n_classes).
    lbl = lbl_ref[...]                                            # (TB, 1) int32
    n_classes = lbias_ref.shape[0]
    cls = jax.lax.broadcasted_iota(jnp.int32, (lbl.shape[0], n_classes), 1)
    onehot = (lbl == cls).astype(jnp.float32)                     # (TB, n_classes)
    h = h + jnp.dot(onehot, lbias_ref[...],
                    preferred_element_type=jnp.float32)
    h = lrelu(h)                                                  # (TB, 512) f32

    h = jnp.dot(h.astype(jnp.bfloat16), w2_ref[...],
                preferred_element_type=jnp.float32) + b2_ref[...]
    # Dropout(0.4) -> identity in eval mode
    h = lrelu(h)                                                  # (TB, 512)

    h = jnp.dot(h.astype(jnp.bfloat16), w3_ref[...],
                preferred_element_type=jnp.float32) + b3_ref[...]
    # Dropout(0.4) -> identity in eval mode
    h = lrelu(h)                                                  # (TB, 512)

    # Head 512 -> 1 on VPU (broadcast mul) + XLU (row reduce); lane-dense
    # (1, TB) store instead of a masked (TB, 1) column.
    v = jnp.sum(h * w4_ref[...], axis=-1) + b4_ref[0, 0]          # (TB,) f32
    out_ref[...] = v[None, :]                                     # (1, TB)


# ------------------------------- wrapper ----------------------------------- #
@jax.jit
def discriminator_forward(img, labels, params):
    """img: (B, C, H, W) float32 (NCHW), labels: (B,) int32 -> validity (B, 1)."""
    B = img.shape[0]
    flat = img.reshape(B, -1)                                     # == img.view(B, -1), stays f32
    Kp = params["w1_img"].shape[0]
    if flat.shape[1] != Kp:                                       # static: pad ragged K with zeros
        flat = jnp.pad(flat, ((0, 0), (0, Kp - flat.shape[1])))
    lbl = labels.reshape(B, 1).astype(jnp.int32)                  # 4 B/row into the kernel

    n_classes, hid = params["label_bias"].shape                   # (10, 512)

    # Batch tiling: large tiles amortize per-step overhead; when B > 128 split
    # into >= 2 tiles so a "parallel" grid keeps both v7x TensorCores busy.
    if B <= 128:
        TB = B
    else:
        half = -(-B // 2)                                         # ceil(B / 2)
        TB = min(512, -(-half // 128) * 128)                      # lane-aligned tile
    ntiles = pl.cdiv(B, TB)
    Bp = ntiles * TB

    out = pl.pallas_call(
        _disc_mlp_kernel,
        out_shape=jax.ShapeDtypeStruct((1, Bp), jnp.float32),
        grid=(ntiles,),
        in_specs=[
            pl.BlockSpec((TB, Kp), lambda i: (i, 0)),             # image rows (f32, cast in-kernel)
            pl.BlockSpec((TB, 1), lambda i: (i, 0)),              # labels (int32)
            pl.BlockSpec((n_classes, hid), lambda i: (0, 0)),     # label-bias table (resident)
            pl.BlockSpec((Kp, hid), lambda i: (0, 0)),            # w1_img (resident, bf16)
            pl.BlockSpec((hid, hid), lambda i: (0, 0)),           # w2     (resident, bf16)
            pl.BlockSpec((1, hid), lambda i: (0, 0)),             # b2
            pl.BlockSpec((hid, hid), lambda i: (0, 0)),           # w3     (resident, bf16)
            pl.BlockSpec((1, hid), lambda i: (0, 0)),             # b3
            pl.BlockSpec((1, hid), lambda i: (0, 0)),             # w4 row (VPU head)
            pl.BlockSpec(memory_space=pltpu.MemorySpace.SMEM),    # b4 scalar in SMEM
        ],
        out_specs=pl.BlockSpec((1, TB), lambda i: (0, i)),        # lane-dense store
        compiler_params=pltpu.CompilerParams(
            dimension_semantics=("parallel",),                    # shard batch tiles across TCs
        ),
    )(flat, lbl, params["label_bias"], params["w1_img"],
      params["w2"], params["b2"], params["w3"], params["b3"],
      params["w4"], params["b4"])

    return out[0, :B].reshape(B, 1)                               # drop tile padding -> (B, 1)


# --------------------------- parameter init -------------------------------- #
def init_params(key, n_classes, img_flat_dim, hidden=512, k_align=256):
    in_dim = n_classes + img_flat_dim
    ks = jax.random.split(key, 9)

    def linear(kw, kb, fan_in, fan_out):
        bound = 1.0 / jnp.sqrt(jnp.float32(fan_in))
        w = jax.random.uniform(kw, (fan_in, fan_out), jnp.float32, -bound, bound)
        b = jax.random.uniform(kb, (1, fan_out), jnp.float32, -bound, bound)
        return w, b

    emb = jax.random.normal(ks[0], (n_classes, n_classes), jnp.float32)  # nn.Embedding ~ N(0,1)
    w1, b1 = linear(ks[1], ks[2], in_dim, hidden)
    w2, b2 = linear(ks[3], ks[4], hidden, hidden)
    w3, b3 = linear(ks[5], ks[6], hidden, hidden)
    w4, b4 = linear(ks[7], ks[8], hidden, 1)

    # Split layer 1 into the image path (MXU, K zero-padded to k_align) and the
    # label path folded into a per-class bias table (rebuilt in-kernel via a
    # one-hot matmul):  label_bias[c] = emb[c] @ w1_lbl + b1.
    w1_img = w1[:img_flat_dim]
    kp = -(-img_flat_dim // k_align) * k_align
    if kp != img_flat_dim:
        w1_img = jnp.pad(w1_img, ((0, kp - img_flat_dim), (0, 0)))
    label_bias = jnp.dot(emb, w1[img_flat_dim:]) + b1             # (n_classes, hidden) f32

    # Layout note: (in, out) here vs. PyTorch's (out, in) -> transpose on import.
    return {
        "w1_img": w1_img.astype(jnp.bfloat16),                    # (Kp, 512) bf16, K aligned
        "label_bias": label_bias,                                 # (n_classes, 512) f32
        "w2": w2.astype(jnp.bfloat16), "b2": b2,
        "w3": w3.astype(jnp.bfloat16), "b3": b3,
        "w4": w4.T,                                               # (1, 512) f32 row for VPU head
        "b4": b4,                                                 # (1, 1) f32 (SMEM scalar)
    }


if __name__ == "__main__":
    # Small shapes consistent with the module: B=2, img_shape=(1,16,16), n_classes=10.
    B, C, H, W = 2, 1, 16, 16
    n_classes = 10

    key = jax.random.PRNGKey(0)
    k_img, k_lbl, k_par = jax.random.split(key, 3)

    img = jax.random.normal(k_img, (B, C, H, W), jnp.float32)             # NCHW
    labels = jax.random.randint(k_lbl, (B,), 0, n_classes, jnp.int32)
    params = init_params(k_par, n_classes, C * H * W)

    # TODO(synk): training-mode Dropout(0.4) masks would need pltpu.prng_seed /
    #             prng_random_bits; this forward implements eval-mode (identity).
    validity = discriminator_forward(img, labels, params)
    validity = jax.block_until_ready(validity)
    assert validity.shape == (B, 1) and validity.dtype == jnp.float32
    print("KERNEL_OK")
</pallas_src>

<mosaic_0001>
module attributes {stable_mosaic.version = 11 : i64} {
  func.func @_disc_mlp_kernel(%arg0: i32, %arg1: memref<2x256xf32, #tpu.memory_space<vmem>>, %arg2: memref<2x1xi32, #tpu.memory_space<vmem>>, %arg3: memref<10x512xf32, #tpu.memory_space<vmem>>, %arg4: memref<256x512xbf16, #tpu.memory_space<vmem>>, %arg5: memref<512x512xbf16, #tpu.memory_space<vmem>>, %arg6: memref<1x512xf32, #tpu.memory_space<vmem>>, %arg7: memref<512x512xbf16, #tpu.memory_space<vmem>>, %arg8: memref<1x512xf32, #tpu.memory_space<vmem>>, %arg9: memref<1x512xf32, #tpu.memory_space<vmem>>, %arg10: memref<1x1xf32, #tpu.memory_space<smem>>, %arg11: memref<1x2xf32, #tpu.memory_space<vmem>>) attributes {dimension_semantics = [#tpu.dimension_semantics<parallel>], iteration_bounds = array<i64: 1>, scalar_prefetch = 0 : i64, scratch_operands = 0 : i64, tpu.core_type = #tpu.core_type<tc>, window_params = [{transform_indices = @transform_0, window_bounds = array<i64: 2, 256>}, {transform_indices = @transform_1, window_bounds = array<i64: 2, 1>}, {pipeline_mode = #tpu.pipeline_mode<synchronous>, transform_indices = @transform_2, window_bounds = array<i64: 10, 512>}, {pipeline_mode = #tpu.pipeline_mode<synchronous>, transform_indices = @transform_3, window_bounds = array<i64: 256, 512>}, {pipeline_mode = #tpu.pipeline_mode<synchronous>, transform_indices = @transform_4, window_bounds = array<i64: 512, 512>}, {pipeline_mode = #tpu.pipeline_mode<synchronous>, transform_indices = @transform_5, window_bounds = array<i64: 1, 512>}, {pipeline_mode = #tpu.pipeline_mode<synchronous>, transform_indices = @transform_6, window_bounds = array<i64: 512, 512>}, {pipeline_mode = #tpu.pipeline_mode<synchronous>, transform_indices = @transform_7, window_bounds = array<i64: 1, 512>}, {pipeline_mode = #tpu.pipeline_mode<synchronous>, transform_indices = @transform_8, window_bounds = array<i64: 1, 512>}, {transform_indices = @transform_9, window_bounds = array<i64: 1, 1>}, {transform_indices = @transform_10, window_bounds = array<i64: 1, 2>}]} {
    %c0 = arith.constant 0 : index
    %c0_0 = arith.constant 0 : index
    %0 = vector.load %arg1[%c0, %c0_0] : memref<2x256xf32, #tpu.memory_space<vmem>>, vector<2x256xf32>
    %1 = arith.truncf %0 : vector<2x256xf32> to vector<2x256xbf16>
    %c0_1 = arith.constant 0 : index
    %c0_2 = arith.constant 0 : index
    %2 = vector.load %arg4[%c0_1, %c0_2] : memref<256x512xbf16, #tpu.memory_space<vmem>>, vector<256x512xbf16>
    %cst = arith.constant dense<0.000000e+00> : vector<2x512xf32>
    %3 = tpu.matmul %1, %2, %cst {dimension_numbers = #tpu.dot_dimension_numbers<[1], [0], [0], [1], [0, 0, 1, 1], [], []>} : vector<2x256xbf16>, vector<256x512xbf16>, vector<2x512xf32> -> vector<2x512xf32>
    %c0_3 = arith.constant 0 : index
    %c0_4 = arith.constant 0 : index
    %4 = vector.load %arg2[%c0_3, %c0_4] : memref<2x1xi32, #tpu.memory_space<vmem>>, vector<2x1xi32>
    %5 = tpu.iota {dimensions = array<i32: 1>} : vector<2x10xi32>
    %6 = vector.broadcast %4 : vector<2x1xi32> to vector<2x10xi32>
    %7 = arith.cmpi eq, %6, %5 : vector<2x10xi32>
    %8 = arith.extui %7 : vector<2x10xi1> to vector<2x10xi32>
    %9 = arith.sitofp %8 : vector<2x10xi32> to vector<2x10xf32>
    %c0_5 = arith.constant 0 : index
    %c0_6 = arith.constant 0 : index
    %10 = vector.load %arg3[%c0_5, %c0_6] : memref<10x512xf32, #tpu.memory_space<vmem>>, vector<10x512xf32>
    %cst_7 = arith.constant dense<0.000000e+00> : vector<2x512xf32>
    %11 = tpu.matmul %9, %10, %cst_7 {dimension_numbers = #tpu.dot_dimension_numbers<[1], [0], [0], [1], [0, 0, 1, 1], [], []>} : vector<2x10xf32>, vector<10x512xf32>, vector<2x512xf32> -> vector<2x512xf32>
    %12 = arith.addf %3, %11 : vector<2x512xf32>
    %cst_8 = arith.constant 0.000000e+00 : f32
    %13 = vector.broadcast %cst_8 : f32 to vector<2x512xf32>
    %14 = arith.cmpf ogt, %12, %13 : vector<2x512xf32>
    %cst_9 = arith.constant 2.000000e-01 : f32
    %15 = vector.broadcast %cst_9 : f32 to vector<2x512xf32>
    %16 = arith.mulf %15, %12 : vector<2x512xf32>
    %17 = arith.select %14, %12, %16 : vector<2x512xi1>, vector<2x512xf32>
    %18 = arith.truncf %17 : vector<2x512xf32> to vector<2x512xbf16>
    %c0_10 = arith.constant 0 : index
    %c0_11 = arith.constant 0 : index
    %19 = vector.load %arg5[%c0_10, %c0_11] : memref<512x512xbf16, #tpu.memory_space<vmem>>, vector<512x512xbf16>
    %cst_12 = arith.constant dense<0.000000e+00> : vector<2x512xf32>
    %20 = tpu.matmul %18, %19, %cst_12 {dimension_numbers = #tpu.dot_dimension_numbers<[1], [0], [0], [1], [0, 0, 1, 1], [], []>} : vector<2x512xbf16>, vector<512x512xbf16>, vector<2x512xf32> -> vector<2x512xf32>
    %c0_13 = arith.constant 0 : index
    %c0_14 = arith.constant 0 : index
    %21 = vector.load %arg6[%c0_13, %c0_14] : memref<1x512xf32, #tpu.memory_space<vmem>>, vector<1x512xf32>
    %22 = vector.broadcast %21 : vector<1x512xf32> to vector<2x512xf32>
    %23 = arith.addf %20, %22 : vector<2x512xf32>
    %cst_15 = arith.constant 0.000000e+00 : f32
    %24 = vector.broadcast %cst_15 : f32 to vector<2x512xf32>
    %25 = arith.cmpf ogt, %23, %24 : vector<2x512xf32>
    %cst_16 = arith.constant 2.000000e-01 : f32
    %26 = vector.broadcast %cst_16 : f32 to vector<2x512xf32>
    %27 = arith.mulf %26, %23 : vector<2x512xf32>
    %28 = arith.select %25, %23, %27 : vector<2x512xi1>, vector<2x512xf32>
    %29 = arith.truncf %28 : vector<2x512xf32> to vector<2x512xbf16>
    %c0_17 = arith.constant 0 : index
    %c0_18 = arith.constant 0 : index
    %30 = vector.load %arg7[%c0_17, %c0_18] : memref<512x512xbf16, #tpu.memory_space<vmem>>, vector<512x512xbf16>
    %cst_19 = arith.constant dense<0.000000e+00> : vector<2x512xf32>
    %31 = tpu.matmul %29, %30, %cst_19 {dimension_numbers = #tpu.dot_dimension_numbers<[1], [0], [0], [1], [0, 0, 1, 1], [], []>} : vector<2x512xbf16>, vector<512x512xbf16>, vector<2x512xf32> -> vector<2x512xf32>
    %c0_20 = arith.constant 0 : index
    %c0_21 = arith.constant 0 : index
    %32 = vector.load %arg8[%c0_20, %c0_21] : memref<1x512xf32, #tpu.memory_space<vmem>>, vector<1x512xf32>
    %33 = vector.broadcast %32 : vector<1x512xf32> to vector<2x512xf32>
    %34 = arith.addf %31, %33 : vector<2x512xf32>
    %cst_22 = arith.constant 0.000000e+00 : f32
    %35 = vector.broadcast %cst_22 : f32 to vector<2x512xf32>
    %36 = arith.cmpf ogt, %34, %35 : vector<2x512xf32>
    %cst_23 = arith.constant 2.000000e-01 : f32
    %37 = vector.broadcast %cst_23 : f32 to vector<2x512xf32>
    %38 = arith.mulf %37, %34 : vector<2x512xf32>
    %39 = arith.select %36, %34, %38 : vector<2x512xi1>, vector<2x512xf32>
    %c0_24 = arith.constant 0 : index
    %c0_25 = arith.constant 0 : index
    %40 = vector.load %arg9[%c0_24, %c0_25] : memref<1x512xf32, #tpu.memory_space<vmem>>, vector<1x512xf32>
    %41 = vector.broadcast %40 : vector<1x512xf32> to vector<2x512xf32>
    %42 = arith.mulf %39, %41 : vector<2x512xf32>
    %cst_26 = arith.constant dense<0.000000e+00> : vector<2xf32>
    %43 = vector.multi_reduction <add>, %42, %cst_26 [1] : vector<2x512xf32> to vector<2xf32>
    %c0_27 = arith.constant 0 : index
    %c0_28 = arith.constant 0 : index
    %44 = memref.load %arg10[%c0_27, %c0_28] : memref<1x1xf32, #tpu.memory_space<smem>>
    %45 = vector.broadcast %44 : f32 to vector<2xf32>
    %46 = arith.addf %43, %45 : vector<2xf32>
    %47 = vector.shape_cast %46 : vector<2xf32> to vector<1x2xf32>
    %c0_29 = arith.constant 0 : index
    %c0_30 = arith.constant 0 : index
    %48 = vector.load %arg11[%c0_29, %c0_30] : memref<1x2xf32, #tpu.memory_space<vmem>>, vector<1x2xf32>
    tpu.vector_store %arg11[%c0_29, %c0_30], %47 {strides = array<i32>} : memref<1x2xf32, #tpu.memory_space<vmem>>, vector<1x2xf32>,
    return
  }
  func.func @transform_0(%arg0: i32) -> (i32, i32) {
    %c0_i32 = arith.constant 0 : i32
    %c0_i32_0 = arith.constant 0 : i32
    return %arg0, %c0_i32 : i32, i32
  }
  func.func @transform_1(%arg0: i32) -> (i32, i32) {
    %c0_i32 = arith.constant 0 : i32
    %c0_i32_0 = arith.constant 0 : i32
    return %arg0, %c0_i32 : i32, i32
  }
  func.func @transform_2(%arg0: i32) -> (i32, i32) {
    %c0_i32 = arith.constant 0 : i32
    %c0_i32_0 = arith.constant 0 : i32
    %c0_i32_1 = arith.constant 0 : i32
    return %c0_i32, %c0_i32_0 : i32, i32
  }
  func.func @transform_3(%arg0: i32) -> (i32, i32) {
    %c0_i32 = arith.constant 0 : i32
    %c0_i32_0 = arith.constant 0 : i32
    %c0_i32_1 = arith.constant 0 : i32
    return %c0_i32, %c0_i32_0 : i32, i32
  }
  func.func @transform_4(%arg0: i32) -> (i32, i32) {
    %c0_i32 = arith.constant 0 : i32
    %c0_i32_0 = arith.constant 0 : i32
    %c0_i32_1 = arith.constant 0 : i32
    return %c0_i32, %c0_i32_0 : i32, i32
  }
  func.func @transform_5(%arg0: i32) -> (i32, i32) {
    %c0_i32 = arith.constant 0 : i32
    %c0_i32_0 = arith.constant 0 : i32
    %c0_i32_1 = arith.constant 0 : i32
    return %c0_i32, %c0_i32_0 : i32, i32
  }
  func.func @transform_6(%arg0: i32) -> (i32, i32) {
    %c0_i32 = arith.constant 0 : i32
    %c0_i32_0 = arith.constant 0 : i32
    %c0_i32_1 = arith.constant 0 : i32
    return %c0_i32, %c0_i32_0 : i32, i32
  }
  func.func @transform_7(%arg0: i32) -> (i32, i32) {
    %c0_i32 = arith.constant 0 : i32
    %c0_i32_0 = arith.constant 0 : i32
    %c0_i32_1 = arith.constant 0 : i32
    return %c0_i32, %c0_i32_0 : i32, i32
  }
  func.func @transform_8(%arg0: i32) -> (i32, i32) {
    %c0_i32 = arith.constant 0 : i32
    %c0_i32_0 = arith.constant 0 : i32
    %c0_i32_1 = arith.constant 0 : i32
    return %c0_i32, %c0_i32_0 : i32, i32
  }
  func.func @transform_9(%arg0: i32) -> (i32, i32) {
    %c0_i32 = arith.constant 0 : i32
    %c0_i32_0 = arith.constant 0 : i32
    %c0_i32_1 = arith.constant 0 : i32
    return %c0_i32, %c0_i32_0 : i32, i32
  }
  func.func @transform_10(%arg0: i32) -> (i32, i32) {
    %c0_i32 = arith.constant 0 : i32
    %c0_i32_0 = arith.constant 0 : i32
    return %c0_i32, %arg0 : i32, i32
  }
}

</mosaic_0001>

<llo_original>
// kernel: discriminator_forward.1
$region0: #{discriminator_forward.1}
  #allocation0 [shape = 'u32[]', space=smem, size = 0x4, offset = 0x4, fixed_abs, tag = 'smem constant byte address 0x4 - core index']
  #allocation1 [shape = 'u32[72,128]{1,0:T(1,128)}', space=vmem, size = 0x9000, scoped, tag = 'internal scratch']
  #allocation2 [shape = 'f32[1,1]{1,0:T(1,128)S(6)}', space=smem, size = 0x200, scoped, tag = 'scoped memory for discriminator_forward.1']
  %s0 = inlined_call_operand.vmem [shape: f32[2,256], index: 0, kind: input, shape index: {}]
  %s1 = inlined_call_operand.vmem [shape: s32[2,1], index: 1, kind: input, shape index: {}]
  %s2 = inlined_call_operand.hbm [shape: f32[10,512], index: 2, kind: input, shape index: {}]
  %s3 = inlined_call_operand.hbm [shape: bf16[256,512], index: 3, kind: input, shape index: {}]
  %s4 = inlined_call_operand.hbm [shape: bf16[512,512], index: 4, kind: input, shape index: {}]
  %s5 = inlined_call_operand.vmem [shape: f32[1,512], index: 5, kind: input, shape index: {}]
  %s6 = inlined_call_operand.hbm [shape: bf16[512,512], index: 6, kind: input, shape index: {}]
  %s7 = inlined_call_operand.vmem [shape: f32[1,512], index: 7, kind: input, shape index: {}]
  %s8 = inlined_call_operand.vmem [shape: f32[1,512], index: 8, kind: input, shape index: {}]
  %s9 = inlined_call_operand.<no memory space> [shape: f32[1,1], index: 9, kind: input, shape index: {}]
  %s10 = inlined_call_operand.hbm [shape: f32[1,2], index: 10, kind: output, shape index: {}]
  %s11 = sld [smem:[#allocation0]]
  $region66: #{discriminator_forward.1} parent=0
    _
  %s13 = ssub.s32 1, %s11
  %s14 = scalar_select 0, %s13, %s11
  %15 = sst [smem:[#allocation2]] %s9
  $region1: #{discriminator_forward.1} parent=0
    #allocation3 [shape = 'u8[32768]{0}', space=vmem, size = 0x8000, scoped, tag = 'input window, operand 2, single buffered']
    #allocation4 [shape = 's32[1]{0}', space=sflag, size = 0x4, scoped, tag = 'scoped memory for discriminator_forward.1']
    #allocation5 [shape = 's32[1]{0}', space=sflag, size = 0x4, scoped, tag = 'scoped memory for discriminator_forward.1']
    #allocation6 [shape = 'u8[262144]{0}', space=vmem, size = 0x40000, scoped, tag = 'input window, operand 3, single buffered']
    #allocation7 [shape = 's32[1]{0}', space=sflag, size = 0x4, scoped, tag = 'scoped memory for discriminator_forward.1']
    #allocation8 [shape = 'u8[524288]{0}', space=vmem, size = 0x80000, scoped, tag = 'input window, operand 4, single buffered']
    #allocation9 [shape = 'u8[524288]{0}', space=vmem, size = 0x80000, scoped, tag = 'input window, operand 6, single buffered']
    #allocation10 [shape = 's32[1]{0}', space=sflag, size = 0x4, scoped, tag = 'scoped memory for discriminator_forward.1']
    #allocation11 [shape = 'u8[512]{0}', space=vmem, size = 0x400, scoped, tag = 'output window, operand 0, single buffered']
    %16 = vsyncpa [#allocation4], 0
    %17 = vsyncpa [#allocation7], 0
    %18 = vsyncpa [#allocation10], 0
    %19 = vsyncpa [#allocation5], 0
    // Predicated region
    $region2: #{discriminator_forward.1} parent=1 // pred_check
      _
    $region3: #{discriminator_forward.1} parent=1 // pred_check_branch
      %21 = sbr.rel (0) target = $region5
    $region4: #{discriminator_forward.1} parent=1 // pred_region
      _
    $region5: #{discriminator_forward.1} parent=1 // pred_fallthru
      _
    // Predicated region
    $region6: #{discriminator_forward.1} parent=1 // pred_check
      _
    $region7: #{discriminator_forward.1} parent=1 // pred_check_branch
      %23 = sbr.rel (0) target = $region9
    $region8: #{discriminator_forward.1} parent=1 // pred_region
      _
    $region9: #{discriminator_forward.1} parent=1 // pred_fallthru
      _
    // Predicated region
    $region10: #{discriminator_forward.1} parent=1 // pred_check
      _
    $region11: #{discriminator_forward.1} parent=1 // pred_check_branch
      %25 = sbr.rel (0) target = $region13
    $region12: #{discriminator_forward.1} parent=1 // pred_region
      %27 = vsyncadd [#allocation4], 0
      %s28 = sshll.u32 %s2, 4
      %s29 = int_to_ptr.hbm [resolvable:$true] %s28
      %s30 = sshll.u32 [#allocation3], 4
      %s31 = int_to_ptr.vmem [resolvable:$true] %s30
      %36 = dma.hbm_to_vmem [thread:$0]  %s29, 1024, %s31, [#allocation4], 512, 512, 32
    $region13: #{discriminator_forward.1} parent=1 // pred_fallthru
      _
    // Predicated region
    $region14: #{discriminator_forward.1} parent=1 // pred_check
      _
    $region15: #{discriminator_forward.1} parent=1 // pred_check_branch
      %38 = sbr.rel (0) target = $region17
    $region16: #{discriminator_forward.1} parent=1 // pred_region
      %40 = vsyncadd [#allocation7], 0
      %s41 = sshll.u32 %s3, 4
      %s42 = int_to_ptr.hbm [resolvable:$true] %s41
      %s43 = sshll.u32 [#allocation6], 4
      %s44 = int_to_ptr.vmem [resolvable:$true] %s43
      %49 = dma.hbm_to_vmem [thread:$0]  %s42, 8192, %s44, [#allocation7], 256, 256, 16
    $region17: #{discriminator_forward.1} parent=1 // pred_fallthru
      _
    // Predicated region
    $region18: #{discriminator_forward.1} parent=1 // pred_check
      _
    $region19: #{discriminator_forward.1} parent=1 // pred_check_branch
      %51 = sbr.rel (0) target = $region21
    $region20: #{discriminator_forward.1} parent=1 // pred_region
      %53 = vsyncadd [#allocation7], 0
      %s54 = sshll.u32 %s4, 4
      %s55 = int_to_ptr.hbm [resolvable:$true] %s54
      %s56 = sshll.u32 [#allocation8], 4
      %s57 = int_to_ptr.vmem [resolvable:$true] %s56
      %62 = dma.hbm_to_vmem [thread:$0]  %s55, 16384, %s57, [#allocation7], 256, 256, 16
    $region21: #{discriminator_forward.1} parent=1 // pred_fallthru
      _
    // Predicated region
    $region22: #{discriminator_forward.1} parent=1 // pred_check
      _
    $region23: #{discriminator_forward.1} parent=1 // pred_check_branch
      %64 = sbr.rel (0) target = $region25
    $region24: #{discriminator_forward.1} parent=1 // pred_region
      _
    $region25: #{discriminator_forward.1} parent=1 // pred_fallthru
      _
    // Predicated region
    $region26: #{discriminator_forward.1} parent=1 // pred_check
      _
    $region27: #{discriminator_forward.1} parent=1 // pred_check_branch
      %66 = sbr.rel (0) target = $region29
    $region28: #{discriminator_forward.1} parent=1 // pred_region
      %68 = vsyncadd [#allocation10], 0
      %s69 = sshll.u32 %s6, 4
      %s70 = int_to_ptr.hbm [resolvable:$true] %s69
      %s71 = sshll.u32 [#allocation9], 4
      %s72 = int_to_ptr.vmem [resolvable:$true] %s71
      %77 = dma.hbm_to_vmem [thread:$0]  %s70, 16384, %s72, [#allocation10], 256, 256, 16
    $region29: #{discriminator_forward.1} parent=1 // pred_fallthru
      _
    // Predicated region
    $region30: #{discriminator_forward.1} parent=1 // pred_check
      _
    $region31: #{discriminator_forward.1} parent=1 // pred_check_branch
      %79 = sbr.rel (0) target = $region33
    $region32: #{discriminator_forward.1} parent=1 // pred_region
      _
    $region33: #{discriminator_forward.1} parent=1 // pred_fallthru
      _
    // Predicated region
    $region34: #{discriminator_forward.1} parent=1 // pred_check
      _
    $region35: #{discriminator_forward.1} parent=1 // pred_check_branch
      %81 = sbr.rel (0) target = $region37
    $region36: #{discriminator_forward.1} parent=1 // pred_region
      _
    $region37: #{discriminator_forward.1} parent=1 // pred_fallthru
      _
    // Predicated region
    $region38: #{discriminator_forward.1} parent=1 // pred_check
      _
    $region39: #{discriminator_forward.1} parent=1 // pred_check_branch
      %83 = sbr.rel (0) target = $region41
    $region40: #{discriminator_forward.1} parent=1 // pred_region
      _
    $region41: #{discriminator_forward.1} parent=1 // pred_fallthru
      _
    // Predicated region
    $region42: #{discriminator_forward.1} parent=1 // pred_check
      _
    $region43: #{discriminator_forward.1} parent=1 // pred_check_branch
      %85 = sbr.rel (0) target = $region45
    $region44: #{discriminator_forward.1} parent=1 // pred_region
      %87 = dma.done [#allocation4], 1024
    $region45: #{discriminator_forward.1} parent=1 // pred_fallthru
      _
    // Predicated region
    $region46: #{discriminator_forward.1} parent=1 // pred_check
      _
    $region47: #{discriminator_forward.1} parent=1 // pred_check_branch
      %89 = sbr.rel (0) target = $region49
    $region48: #{discriminator_forward.1} parent=1 // pred_region
      %91 = dma.done [#allocation7], 8192
    $region49: #{discriminator_forward.1} parent=1 // pred_fallthru
      _
    // Predicated region
    $region50: #{discriminator_forward.1} parent=1 // pred_check
      _
    $region51: #{discriminator_forward.1} parent=1 // pred_check_branch
      %93 = sbr.rel (0) target = $region53
    $region52: #{discriminator_forward.1} parent=1 // pred_region
      %95 = dma.done [#allocation7], 16384
    $region53: #{discriminator_forward.1} parent=1 // pred_fallthru
      _
    // Predicated region
    $region54: #{discriminator_forward.1} parent=1 // pred_check
      _
    $region55: #{discriminator_forward.1} parent=1 // pred_check_branch
      %97 = sbr.rel (0) target = $region57
    $region56: #{discriminator_forward.1} parent=1 // pred_region
      %99 = dma.done [#allocation10], 16384
    $region57: #{discriminator_forward.1} parent=1 // pred_fallthru
      _
    %v100 = vld [vmem:[%s0] sm:$0xf]
    %102 = vst [vmem:[#allocation1] ss:$4 sm:$0xff] %v100
    %v103 = vld.sshfl [vmem:[#allocation1] sm:$0xff pattern:$0x73625140]
    %v104 = vld.sshfl [vmem:[#allocation1 + $0x8] sm:$0xff pattern:$0x73625140]
    %v107 = vpack.c.bf16 %v103, %v103
    %v108 = vpack.c.bf16 %v104, %v104
    %v109 = vld [vmem:[#allocation6] sm:$0xff]
    %v110 = vld [vmem:[#allocation6 + $0x8] sm:$0xff]
    %v111 = vld [vmem:[#allocation6 + $0x10] sm:$0xff]
    %v112 = vld [vmem:[#allocation6 + $0x18] sm:$0xff]
    %v113 = vld [vmem:[#allocation6 + $0x20] sm:$0xff]
    %v114 = vld [vmem:[#allocation6 + $0x28] sm:$0xff]
    %v115 = vld [vmem:[#allocation6 + $0x30] sm:$0xff]
    %v116 = vld [vmem:[#allocation6 + $0x38] sm:$0xff]
    %v117 = vld [vmem:[#allocation6 + $0x40] sm:$0xff]
    %v118 = vld [vmem:[#allocation6 + $0x48] sm:$0xff]
    %v119 = vld [vmem:[#allocation6 + $0x50] sm:$0xff]
    %v120 = vld [vmem:[#allocation6 + $0x58] sm:$0xff]
    %v121 = vld [vmem:[#allocation6 + $0x60] sm:$0xff]
    %v122 = vld [vmem:[#allocation6 + $0x68] sm:$0xff]
    %v123 = vld [vmem:[#allocation6 + $0x70] sm:$0xff]
    %v124 = vld [vmem:[#allocation6 + $0x78] sm:$0xff]
    %v125 = vld [vmem:[#allocation6 + $0x80] sm:$0xff]
    %v126 = vld [vmem:[#allocation6 + $0x88] sm:$0xff]
    %v127 = vld [vmem:[#allocation6 + $0x90] sm:$0xff]
    %v128 = vld [vmem:[#allocation6 + $0x98] sm:$0xff]
    %v129 = vld [vmem:[#allocation6 + $0xa0] sm:$0xff]
    %v130 = vld [vmem:[#allocation6 + $0xa8] sm:$0xff]
    %v131 = vld [vmem:[#allocation6 + $0xb0] sm:$0xff]
    %v132 = vld [vmem:[#allocation6 + $0xb8] sm:$0xff]
    %v133 = vld [vmem:[#allocation6 + $0xc0] sm:$0xff]
    %v134 = vld [vmem:[#allocation6 + $0xc8] sm:$0xff]
    %v135 = vld [vmem:[#allocation6 + $0xd0] sm:$0xff]
    %v136 = vld [vmem:[#allocation6 + $0xd8] sm:$0xff]
    %v137 = vld [vmem:[#allocation6 + $0xe0] sm:$0xff]
    %v138 = vld [vmem:[#allocation6 + $0xe8] sm:$0xff]
    %v139 = vld [vmem:[#allocation6 + $0xf0] sm:$0xff]
    %v140 = vld [vmem:[#allocation6 + $0xf8] sm:$0xff]
    %v141 = vld [vmem:[#allocation6 + $0x100] sm:$0xff]
    %v142 = vld [vmem:[#allocation6 + $0x108] sm:$0xff]
    %v143 = vld [vmem:[#allocation6 + $0x110] sm:$0xff]
    %v144 = vld [vmem:[#allocation6 + $0x118] sm:$0xff]
    %v145 = vld [vmem:[#allocation6 + $0x120] sm:$0xff]
    %v146 = vld [vmem:[#allocation6 + $0x128] sm:$0xff]
    %v147 = vld [vmem:[#allocation6 + $0x130] sm:$0xff]
    %v148 = vld [vmem:[#allocation6 + $0x138] sm:$0xff]
    %v149 = vld [vmem:[#allocation6 + $0x140] sm:$0xff]
    %v150 = vld [vmem:[#allocation6 + $0x148] sm:$0xff]
    %v151 = vld [vmem:[#allocation6 + $0x150] sm:$0xff]
    %v152 = vld [vmem:[#allocation6 + $0x158] sm:$0xff]
    %v153 = vld [vmem:[#allocation6 + $0x160] sm:$0xff]
    %v154 = vld [vmem:[#allocation6 + $0x168] sm:$0xff]
    %v155 = vld [vmem:[#allocation6 + $0x170] sm:$0xff]
    %v156 = vld [vmem:[#allocation6 + $0x178] sm:$0xff]
    %v157 = vld [vmem:[#allocation6 + $0x180] sm:$0xff]
    %v158 = vld [vmem:[#allocation6 + $0x188] sm:$0xff]
    %v159 = vld [vmem:[#allocation6 + $0x190] sm:$0xff]
    %v160 = vld [vmem:[#allocation6 + $0x198] sm:$0xff]
    %v161 = vld [vmem:[#allocation6 + $0x1a0] sm:$0xff]
    %v162 = vld [vmem:[#allocation6 + $0x1a8] sm:$0xff]
    %v163 = vld [vmem:[#allocation6 + $0x1b0] sm:$0xff]
    %v164 = vld [vmem:[#allocation6 + $0x1b8] sm:$0xff]
    %v165 = vld [vmem:[#allocation6 + $0x1c0] sm:$0xff]
    %v166 = vld [vmem:[#allocation6 + $0x1c8] sm:$0xff]
    %v167 = vld [vmem:[#allocation6 + $0x1d0] sm:$0xff]
    %v168 = vld [vmem:[#allocation6 + $0x1d8] sm:$0xff]
    %v169 = vld [vmem:[#allocation6 + $0x1e0] sm:$0xff]
    %v170 = vld [vmem:[#allocation6 + $0x1e8] sm:$0xff]
    %v171 = vld [vmem:[#allocation6 + $0x1f0] sm:$0xff]
    %v172 = vld [vmem:[#allocation6 + $0x1f8] sm:$0xff]
    %v173 = vld [vmem:[%s1] sm:$0x3]
    %v174 = vlaneseq
    %v175 = vand.u32 %v174, 127
    %176 = vset.pattern.permute.xlu0 0
    %177 = vperm.xlu0 %176, %v173
    %v178 = vpop.permute.xlu0 %177
    %vm179 = vcmp.eq.s32.totalorder %v178, %v175
    %v180 = vsel %vm179, 1, 0
    %v181 = vcvt.s32.f32 %v180
    %v182 = vld [vmem:[#allocation3] sm:$0xff]
    %v183 = vld [vmem:[#allocation3 + $0x8] sm:$0xff]
    %v184 = vld [vmem:[#allocation3 + $0x10] sm:$0xff]
    %v185 = vld [vmem:[#allocation3 + $0x18] sm:$0xff]
    %v186 = vld [vmem:[#allocation3 + $0x20] sm:$0x3]
    %v187 = vld [vmem:[#allocation3 + $0x28] sm:$0x3]
    %v188 = vld [vmem:[#allocation3 + $0x30] sm:$0x3]
    %v189 = vld [vmem:[#allocation3 + $0x38] sm:$0x3]
    %vm190 = vcmask 80896
    %v192 = vsel %vm190, %v181, 0
    %vm194 = vcmask 1041408
    %v196 = vsel %vm194, %v186, 0
    %v199 = vsel %vm194, %v187, 0
    %v202 = vsel %vm194, %v188, 0
    %v205 = vsel %vm194, %v189, 0
    %207 = vmatpush.msra.mxu0 0.0
    %208 = vmatpush.msra.mxu0 0.0
    %209 = vmatpush.msra.mxu0 0.0
    %210 = vmatpush.msra.mxu0 0.0
    %211 = vmatpush.msra.mxu0 0.0
    %212 = vmatpush.msra.mxu0 0.0
    %213 = vmatpush.msra.mxu0 0.0
    %214 = vmatpush.msra.mxu0 0.0
    %215 = vmatpush.msra.mxu0 0.0
    %216 = vmatpush.msra.mxu0 0.0
    %217 = vmatpush.msra.mxu0 0.0
    %218 = vmatpush.msra.mxu0 0.0
    %219 = vmatpush.msra.mxu0 0.0
    %220 = vmatpush.msra.mxu0 0.0
    %221 = vmatpush.msra.mxu0 %v196
    %222 = vmatpush.msra.mxu0 %v182
    %223 = vmatmul.f32.gmra.mxu0 %v192
    %v224 = vpop.f32.mrf.mxu0
    %v225 = vadd.f32 0.0, %v224
    %226 = vdwg.mxu0
    %227 = vmatpush.msra.mxu0 0.0
    %228 = vmatpush.msra.mxu0 0.0
    %229 = vmatpush.msra.mxu0 0.0
    %230 = vmatpush.msra.mxu0 0.0
    %231 = vmatpush.msra.mxu0 0.0
    %232 = vmatpush.msra.mxu0 0.0
    %233 = vmatpush.msra.mxu0 0.0
    %234 = vmatpush.msra.mxu0 0.0
    %235 = vmatpush.msra.mxu0 0.0
    %236 = vmatpush.msra.mxu0 0.0
    %237 = vmatpush.msra.mxu0 0.0
    %238 = vmatpush.msra.mxu0 0.0
    %239 = vmatpush.msra.mxu0 0.0
    %240 = vmatpush.msra.mxu0 0.0
    %241 = vmatpush.msra.mxu0 %v199
    %242 = vmatpush.msra.mxu0 %v183
    %243 = vmatmul.f32.gmra.mxu0 %v192
    %v244 = vpop.f32.mrf.mxu0
    %v245 = vadd.f32 0.0, %v244
    %246 = vdwg.mxu0
    %247 = vmatpush.msra.mxu0 0.0
    %248 = vmatpush.msra.mxu0 0.0
    %249 = vmatpush.msra.mxu0 0.0
    %250 = vmatpush.msra.mxu0 0.0
    %251 = vmatpush.msra.mxu0 0.0
    %252 = vmatpush.msra.mxu0 0.0
    %253 = vmatpush.msra.mxu0 0.0
    %254 = vmatpush.msra.mxu0 0.0
    %255 = vmatpush.msra.mxu0 0.0
    %256 = vmatpush.msra.mxu0 0.0
    %257 = vmatpush.msra.mxu0 0.0
    %258 = vmatpush.msra.mxu0 0.0
    %259 = vmatpush.msra.mxu0 0.0
    %260 = vmatpush.msra.mxu0 0.0
    %261 = vmatpush.msra.mxu0 %v202
    %262 = vmatpush.msra.mxu0 %v184
    %263 = vmatmul.f32.gmra.mxu0 %v192
    %v264 = vpop.f32.mrf.mxu0
    %v265 = vadd.f32 0.0, %v264
    %266 = vdwg.mxu0
    %267 = vmatpush.msra.mxu0 0.0
    %268 = vmatpush.msra.mxu0 0.0
    %269 = vmatpush.msra.mxu0 0.0
    %270 = vmatpush.msra.mxu0 0.0
    %271 = vmatpush.msra.mxu0 0.0
    %272 = vmatpush.msra.mxu0 0.0
    %273 = vmatpush.msra.mxu0 0.0
    %274 = vmatpush.msra.mxu0 0.0
    %275 = vmatpush.msra.mxu0 0.0
    %276 = vmatpush.msra.mxu0 0.0
    %277 = vmatpush.msra.mxu0 0.0
    %278 = vmatpush.msra.mxu0 0.0
    %279 = vmatpush.msra.mxu0 0.0
    %280 = vmatpush.msra.mxu0 0.0
    %281 = vmatpush.msra.mxu0 %v205
    %282 = vmatpush.msra.mxu0 %v185
    %283 = vmatmul.f32.gmra.mxu0 %v192
    %v284 = vpop.f32.mrf.mxu0
    %v285 = vadd.f32 0.0, %v284
    %286 = vdwg.mxu0
    %v351 = vunpack.c.l.b16 %v109
    %v352 = vunpack.c.h.b16 %v109
    %v353 = vunpack.c.l.b16 %v110
    %v354 = vunpack.c.h.b16 %v110
    %v355 = vunpack.c.l.b16 %v111
    %v356 = vunpack.c.h.b16 %v111
    %v357 = vunpack.c.l.b16 %v112
    %v358 = vunpack.c.h.b16 %v112
    %v359 = vunpack.c.l.b16 %v113
    %v360 = vunpack.c.h.b16 %v113
    %v361 = vunpack.c.l.b16 %v114
    %v362 = vunpack.c.h.b16 %v114
    %v363 = vunpack.c.l.b16 %v115
    %v364 = vunpack.c.h.b16 %v115
    %v365 = vunpack.c.l.b16 %v116
    %v366 = vunpack.c.h.b16 %v116
    %v367 = vunpack.c.l.b16 %v117
    %v368 = vunpack.c.h.b16 %v117
    %v369 = vunpack.c.l.b16 %v118
    %v370 = vunpack.c.h.b16 %v118
    %v371 = vunpack.c.l.b16 %v119
    %v372 = vunpack.c.h.b16 %v119
    %v373 = vunpack.c.l.b16 %v120
    %v374 = vunpack.c.h.b16 %v120
    %v375 = vunpack.c.l.b16 %v121
    %v376 = vunpack.c.h.b16 %v121
    %v377 = vunpack.c.l.b16 %v122
    %v378 = vunpack.c.h.b16 %v122
    %v379 = vunpack.c.l.b16 %v123
    %v380 = vunpack.c.h.b16 %v123
    %v381 = vunpack.c.l.b16 %v124
    %v382 = vunpack.c.h.b16 %v124
    %v383 = vunpack.c.l.b16 %v125
    %v384 = vunpack.c.h.b16 %v125
    %v385 = vunpack.c.l.b16 %v126
    %v386 = vunpack.c.h.b16 %v126
    %v387 = vunpack.c.l.b16 %v127
    %v388 = vunpack.c.h.b16 %v127
    %v389 = vunpack.c.l.b16 %v128
    %v390 = vunpack.c.h.b16 %v128
    %v391 = vunpack.c.l.b16 %v129
    %v392 = vunpack.c.h.b16 %v129
    %v393 = vunpack.c.l.b16 %v130
    %v394 = vunpack.c.h.b16 %v130
    %v395 = vunpack.c.l.b16 %v131
    %v396 = vunpack.c.h.b16 %v131
    %v397 = vunpack.c.l.b16 %v132
    %v398 = vunpack.c.h.b16 %v132
    %v399 = vunpack.c.l.b16 %v133
    %v400 = vunpack.c.h.b16 %v133
    %v401 = vunpack.c.l.b16 %v134
    %v402 = vunpack.c.h.b16 %v134
    %v403 = vunpack.c.l.b16 %v135
    %v404 = vunpack.c.h.b16 %v135
    %v405 = vunpack.c.l.b16 %v136
    %v406 = vunpack.c.h.b16 %v136
    %v407 = vunpack.c.l.b16 %v137
    %v408 = vunpack.c.h.b16 %v137
    %v409 = vunpack.c.l.b16 %v138
    %v410 = vunpack.c.h.b16 %v138
    %v411 = vunpack.c.l.b16 %v139
    %v412 = vunpack.c.h.b16 %v139
    %v413 = vunpack.c.l.b16 %v140
    %v414 = vunpack.c.h.b16 %v140
    %v415 = vunpack.c.l.b16 %v141
    %v416 = vunpack.c.h.b16 %v141
    %v417 = vunpack.c.l.b16 %v142
    %v418 = vunpack.c.h.b16 %v142
    %v419 = vunpack.c.l.b16 %v143
    %v420 = vunpack.c.h.b16 %v143
    %v421 = vunpack.c.l.b16 %v144
    %v422 = vunpack.c.h.b16 %v144
    %v423 = vunpack.c.l.b16 %v145
    %v424 = vunpack.c.h.b16 %v145
    %v425 = vunpack.c.l.b16 %v146
    %v426 = vunpack.c.h.b16 %v146
    %v427 = vunpack.c.l.b16 %v147
    %v428 = vunpack.c.h.b16 %v147
    %v429 = vunpack.c.l.b16 %v148
    %v430 = vunpack.c.h.b16 %v148
    %v431 = vunpack.c.l.b16 %v149
    %v432 = vunpack.c.h.b16 %v149
    %v433 = vunpack.c.l.b16 %v150
    %v434 = vunpack.c.h.b16 %v150
    %v435 = vunpack.c.l.b16 %v151
    %v436 = vunpack.c.h.b16 %v151
    %v437 = vunpack.c.l.b16 %v152
    %v438 = vunpack.c.h.b16 %v152
    %v439 = vunpack.c.l.b16 %v153
    %v440 = vunpack.c.h.b16 %v153
    %v441 = vunpack.c.l.b16 %v154
    %v442 = vunpack.c.h.b16 %v154
    %v443 = vunpack.c.l.b16 %v155
    %v444 = vunpack.c.h.b16 %v155
    %v445 = vunpack.c.l.b16 %v156
    %v446 = vunpack.c.h.b16 %v156
    %v447 = vunpack.c.l.b16 %v157
    %v448 = vunpack.c.h.b16 %v157
    %v449 = vunpack.c.l.b16 %v158
    %v450 = vunpack.c.h.b16 %v158
    %v451 = vunpack.c.l.b16 %v159
    %v452 = vunpack.c.h.b16 %v159
    %v453 = vunpack.c.l.b16 %v160
    %v454 = vunpack.c.h.b16 %v160
    %v455 = vunpack.c.l.b16 %v161
    %v456 = vunpack.c.h.b16 %v161
    %v457 = vunpack.c.l.b16 %v162
    %v458 = vunpack.c.h.b16 %v162
    %v459 = vunpack.c.l.b16 %v163
    %v460 = vunpack.c.h.b16 %v163
    %v461 = vunpack.c.l.b16 %v164
    %v462 = vunpack.c.h.b16 %v164
    %v463 = vunpack.c.l.b16 %v165
    %v464 = vunpack.c.h.b16 %v165
    %v465 = vunpack.c.l.b16 %v166
    %v466 = vunpack.c.h.b16 %v166
    %v467 = vunpack.c.l.b16 %v167
    %v468 = vunpack.c.h.b16 %v167
    %v469 = vunpack.c.l.b16 %v168
    %v470 = vunpack.c.h.b16 %v168
    %v471 = vunpack.c.l.b16 %v169
    %v472 = vunpack.c.h.b16 %v169
    %v473 = vunpack.c.l.b16 %v170
    %v474 = vunpack.c.h.b16 %v170
    %v475 = vunpack.c.l.b16 %v171
    %v476 = vunpack.c.h.b16 %v171
    %v477 = vunpack.c.l.b16 %v172
    %v478 = vunpack.c.h.b16 %v172
    %v479 = vpack.c.b16 %v355, %v351
    %v480 = vpack.c.b16 %v356, %v352
    %v481 = vpack.c.b16 %v357, %v353
    %v482 = vpack.c.b16 %v358, %v354
    %v483 = vpack.c.b16 %v363, %v359
    %v484 = vpack.c.b16 %v364, %v360
    %v485 = vpack.c.b16 %v365, %v361
    %v486 = vpack.c.b16 %v366, %v362
    %v487 = vpack.c.b16 %v371, %v367
    %v488 = vpack.c.b16 %v372, %v368
    %v489 = vpack.c.b16 %v373, %v369
    %v490 = vpack.c.b16 %v374, %v370
    %v491 = vpack.c.b16 %v379, %v375
    %v492 = vpack.c.b16 %v380, %v376
    %v493 = vpack.c.b16 %v381, %v377
    %v494 = vpack.c.b16 %v382, %v378
    %v495 = vpack.c.b16 %v387, %v383
    %v496 = vpack.c.b16 %v388, %v384
    %v497 = vpack.c.b16 %v389, %v385
    %v498 = vpack.c.b16 %v390, %v386
    %v499 = vpack.c.b16 %v395, %v391
    %v500 = vpack.c.b16 %v396, %v392
    %v501 = vpack.c.b16 %v397, %v393
    %v502 = vpack.c.b16 %v398, %v394
    %v503 = vpack.c.b16 %v403, %v399
    %v504 = vpack.c.b16 %v404, %v400
    %v505 = vpack.c.b16 %v405, %v401
    %v506 = vpack.c.b16 %v406, %v402
    %v507 = vpack.c.b16 %v411, %v407
    %v508 = vpack.c.b16 %v412, %v408
    %v509 = vpack.c.b16 %v413, %v409
    %v510 = vpack.c.b16 %v414, %v410
    %v511 = vpack.c.b16 %v419, %v415
    %v512 = vpack.c.b16 %v420, %v416
    %v513 = vpack.c.b16 %v421, %v417
    %v514 = vpack.c.b16 %v422, %v418
    %v515 = vpack.c.b16 %v427, %v423
    %v516 = vpack.c.b16 %v428, %v424
    %v517 = vpack.c.b16 %v429, %v425
    %v518 = vpack.c.b16 %v430, %v426
    %v519 = vpack.c.b16 %v435, %v431
    %v520 = vpack.c.b16 %v436, %v432
    %v521 = vpack.c.b16 %v437, %v433
    %v522 = vpack.c.b16 %v438, %v434
    %v523 = vpack.c.b16 %v443, %v439
    %v524 = vpack.c.b16 %v444, %v440
    %v525 = vpack.c.b16 %v445, %v441
    %v526 = vpack.c.b16 %v446, %v442
    %v527 = vpack.c.b16 %v451, %v447
    %v528 = vpack.c.b16 %v452, %v448
    %v529 = vpack.c.b16 %v453, %v449
    %v530 = vpack.c.b16 %v454, %v450
    %v531 = vpack.c.b16 %v459, %v455
    %v532 = vpack.c.b16 %v460, %v456
    %v533 = vpack.c.b16 %v461, %v457
    %v534 = vpack.c.b16 %v462, %v458
    %v535 = vpack.c.b16 %v467, %v463
    %v536 = vpack.c.b16 %v468, %v464
    %v537 = vpack.c.b16 %v469, %v465
    %v538 = vpack.c.b16 %v470, %v466
    %v539 = vpack.c.b16 %v475, %v471
    %v540 = vpack.c.b16 %v476, %v472
    %v541 = vpack.c.b16 %v477, %v473
    %v542 = vpack.c.b16 %v478, %v474
    %607 = vmatpush.bf16.msra.mxu0 %v507
    %608 = vmatpush.bf16.msra.mxu0 %v503
    %609 = vmatpush.bf16.msra.mxu0 %v499
    %610 = vmatpush.bf16.msra.mxu0 %v495
    %611 = vmatpush.bf16.msra.mxu0 %v491
    %612 = vmatpush.bf16.msra.mxu0 %v487
    %613 = vmatpush.bf16.msra.mxu0 %v483
    %614 = vmatpush.bf16.msra.mxu0 %v479
    %615 = vmatmul.bf16.gmra.mxu0 %v107
    %v616 = vpop.f32.mrf.mxu0
    %v617 = vadd.f32 %v225, %v616
    %v618 = vpop.f32.mrf.mxu0
    %619 = vdwg.mxu0
    %620 = vmatpush.bf16.msra.mxu0 %v539
    %621 = vmatpush.bf16.msra.mxu0 %v535
    %622 = vmatpush.bf16.msra.mxu0 %v531
    %623 = vmatpush.bf16.msra.mxu0 %v527
    %624 = vmatpush.bf16.msra.mxu0 %v523
    %625 = vmatpush.bf16.msra.mxu0 %v519
    %626 = vmatpush.bf16.msra.mxu0 %v515
    %627 = vmatpush.bf16.msra.mxu0 %v511
    %628 = vmatmul.bf16.gmra.mxu0 %v108
    %v629 = vpop.f32.mrf.mxu0
    %v630 = vadd.f32 %v617, %v629
    %v631 = vpop.f32.mrf.mxu0
    %632 = vdwg.mxu0
    %633 = vmatpush.bf16.msra.mxu0 %v508
    %634 = vmatpush.bf16.msra.mxu0 %v504
    %635 = vmatpush.bf16.msra.mxu0 %v500
    %636 = vmatpush.bf16.msra.mxu0 %v496
    %637 = vmatpush.bf16.msra.mxu0 %v492
    %638 = vmatpush.bf16.msra.mxu0 %v488
    %639 = vmatpush.bf16.msra.mxu0 %v484
    %640 = vmatpush.bf16.msra.mxu0 %v480
    %641 = vmatmul.bf16.gmra.mxu0 %v107
    %v642 = vpop.f32.mrf.mxu0
    %v643 = vadd.f32 %v245, %v642
    %v644 = vpop.f32.mrf.mxu0
    %645 = vdwg.mxu0
    %646 = vmatpush.bf16.msra.mxu0 %v540
    %647 = vmatpush.bf16.msra.mxu0 %v536
    %648 = vmatpush.bf16.msra.mxu0 %v532
    %649 = vmatpush.bf16.msra.mxu0 %v528
    %650 = vmatpush.bf16.msra.mxu0 %v524
    %651 = vmatpush.bf16.msra.mxu0 %v520
    %652 = vmatpush.bf16.msra.mxu0 %v516
    %653 = vmatpush.bf16.msra.mxu0 %v512
    %654 = vmatmul.bf16.gmra.mxu0 %v108
    %v655 = vpop.f32.mrf.mxu0
    %v656 = vadd.f32 %v643, %v655
    %v657 = vpop.f32.mrf.mxu0
    %658 = vdwg.mxu0
    %659 = vmatpush.bf16.msra.mxu0 %v509
    %660 = vmatpush.bf16.msra.mxu0 %v505
    %661 = vmatpush.bf16.msra.mxu0 %v501
    %662 = vmatpush.bf16.msra.mxu0 %v497
    %663 = vmatpush.bf16.msra.mxu0 %v493
    %664 = vmatpush.bf16.msra.mxu0 %v489
    %665 = vmatpush.bf16.msra.mxu0 %v485
    %666 = vmatpush.bf16.msra.mxu0 %v481
    %667 = vmatmul.bf16.gmra.mxu0 %v107
    %v668 = vpop.f32.mrf.mxu0
    %v669 = vadd.f32 %v265, %v668
    %v670 = vpop.f32.mrf.mxu0
    %671 = vdwg.mxu0
    %672 = vmatpush.bf16.msra.mxu0 %v541
    %673 = vmatpush.bf16.msra.mxu0 %v537
    %674 = vmatpush.bf16.msra.mxu0 %v533
    %675 = vmatpush.bf16.msra.mxu0 %v529
    %676 = vmatpush.bf16.msra.mxu0 %v525
    %677 = vmatpush.bf16.msra.mxu0 %v521
    %678 = vmatpush.bf16.msra.mxu0 %v517
    %679 = vmatpush.bf16.msra.mxu0 %v513
    %680 = vmatmul.bf16.gmra.mxu0 %v108
    %v681 = vpop.f32.mrf.mxu0
    %v682 = vadd.f32 %v669, %v681
    %v683 = vpop.f32.mrf.mxu0
    %684 = vdwg.mxu0
    %685 = vmatpush.bf16.msra.mxu0 %v510
    %686 = vmatpush.bf16.msra.mxu0 %v506
    %687 = vmatpush.bf16.msra.mxu0 %v502
    %688 = vmatpush.bf16.msra.mxu0 %v498
    %689 = vmatpush.bf16.msra.mxu0 %v494
    %690 = vmatpush.bf16.msra.mxu0 %v490
    %691 = vmatpush.bf16.msra.mxu0 %v486
    %692 = vmatpush.bf16.msra.mxu0 %v482
    %693 = vmatmul.bf16.gmra.mxu0 %v107
    %v694 = vpop.f32.mrf.mxu0
    %v695 = vadd.f32 %v285, %v694
    %v696 = vpop.f32.mrf.mxu0
    %697 = vdwg.mxu0
    %698 = vmatpush.bf16.msra.mxu0 %v542
    %699 = vmatpush.bf16.msra.mxu0 %v538
    %700 = vmatpush.bf16.msra.mxu0 %v534
    %701 = vmatpush.bf16.msra.mxu0 %v530
    %702 = vmatpush.bf16.msra.mxu0 %v526
    %703 = vmatpush.bf16.msra.mxu0 %v522
    %704 = vmatpush.bf16.msra.mxu0 %v518
    %705 = vmatpush.bf16.msra.mxu0 %v514
    %706 = vmatmul.bf16.gmra.mxu0 %v108
    %v707 = vpop.f32.mrf.mxu0
    %v708 = vadd.f32 %v695, %v707
    %v709 = vpop.f32.mrf.mxu0
    %710 = vdwg.mxu0
    %vm711 = vcmp.gt.f32.partialorder %v630, 0.0
    %vm712 = vcmp.gt.f32.partialorder %v656, 0.0
    %vm713 = vcmp.gt.f32.partialorder %v682, 0.0
    %vm714 = vcmp.gt.f32.partialorder %v708, 0.0
    %v715 = vmul.f32 %v630, 0.2
    %v716 = vmul.f32 %v656, 0.2
    %v717 = vmul.f32 %v682, 0.2
    %v718 = vmul.f32 %v708, 0.2
    %v719 = vsel %vm711, %v630, %v715
    %v720 = vsel %vm712, %v656, %v716
    %v721 = vsel %vm713, %v682, %v717
    %v722 = vsel %vm714, %v708, %v718
    %v723 = vpack.c.bf16 %v719, %v719
    %v724 = vpack.c.bf16 %v720, %v720
    %v725 = vpack.c.bf16 %v721, %v721
    %v726 = vpack.c.bf16 %v722, %v722
    %v727 = vld [vmem:[#allocation8] sm:$0xff]
    %v728 = vld [vmem:[#allocation8 + $0x8] sm:$0xff]
    %v729 = vld [vmem:[#allocation8 + $0x10] sm:$0xff]
    %v730 = vld [vmem:[#allocation8 + $0x18] sm:$0xff]
    %v731 = vld [vmem:[#allocation8 + $0x20] sm:$0xff]
    %v732 = vld [vmem:[#allocation8 + $0x28] sm:$0xff]
    %v733 = vld [vmem:[#allocation8 + $0x30] sm:$0xff]
    %v734 = vld [vmem:[#allocation8 + $0x38] sm:$0xff]
    %v735 = vld [vmem:[#allocation8 + $0x40] sm:$0xff]
    %v736 = vld [vmem:[#allocation8 + $0x48] sm:$0xff]
    %v737 = vld [vmem:[#allocation8 + $0x50] sm:$0xff]
    %v738 = vld [vmem:[#allocation8 + $0x58] sm:$0xff]
    %v739 = vld [vmem:[#allocation8 + $0x60] sm:$0xff]
    %v740 = vld [vmem:[#allocation8 + $0x68] sm:$0xff]
    %v741 = vld [vmem:[#allocation8 + $0x70] sm:$0xff]
    %v742 = vld [vmem:[#allocation8 + $0x78] sm:$0xff]
    %v743 = vld [vmem:[#allocation8 + $0x80] sm:$0xff]
    %v744 = vld [vmem:[#allocation8 + $0x88] sm:$0xff]
    %v745 = vld [vmem:[#allocation8 + $0x90] sm:$0xff]
    %v746 = vld [vmem:[#allocation8 + $0x98] sm:$0xff]
    %v747 = vld [vmem:[#allocation8 + $0xa0] sm:$0xff]
    %v748 = vld [vmem:[#allocation8 + $0xa8] sm:$0xff]
    %v749 = vld [vmem:[#allocation8 + $0xb0] sm:$0xff]
    %v750 = vld [vmem:[#allocation8 + $0xb8] sm:$0xff]
    %v751 = vld [vmem:[#allocation8 + $0xc0] sm:$0xff]
    %v752 = vld [vmem:[#allocation8 + $0xc8] sm:$0xff]
    %v753 = vld [vmem:[#allocation8 + $0xd0] sm:$0xff]
    %v754 = vld [vmem:[#allocation8 + $0xd8] sm:$0xff]
    %v755 = vld [vmem:[#allocation8 + $0xe0] sm:$0xff]
    %v756 = vld [vmem:[#allocation8 + $0xe8] sm:$0xff]
    %v757 = vld [vmem:[#allocation8 + $0xf0] sm:$0xff]
    %v758 = vld [vmem:[#allocation8 + $0xf8] sm:$0xff]
    %v759 = vld [vmem:[#allocation8 + $0x100] sm:$0xff]
    %v760 = vld [vmem:[#allocation8 + $0x108] sm:$0xff]
    %v761 = vld [vmem:[#allocation8 + $0x110] sm:$0xff]
    %v762 = vld [vmem:[#allocation8 + $0x118] sm:$0xff]
    %v763 = vld [vmem:[#allocation8 + $0x120] sm:$0xff]
    %v764 = vld [vmem:[#allocation8 + $0x128] sm:$0xff]
    %v765 = vld [vmem:[#allocation8 + $0x130] sm:$0xff]
    %v766 = vld [vmem:[#allocation8 + $0x138] sm:$0xff]
    %v767 = vld [vmem:[#allocation8 + $0x140] sm:$0xff]
    %v768 = vld [vmem:[#allocation8 + $0x148] sm:$0xff]
    %v769 = vld [vmem:[#allocation8 + $0x150] sm:$0xff]
    %v770 = vld [vmem:[#allocation8 + $0x158] sm:$0xff]
    %v771 = vld [vmem:[#allocation8 + $0x160] sm:$0xff]
    %v772 = vld [vmem:[#allocation8 + $0x168] sm:$0xff]
    %v773 = vld [vmem:[#allocation8 + $0x170] sm:$0xff]
    %v774 = vld [vmem:[#allocation8 + $0x178] sm:$0xff]
    %v775 = vld [vmem:[#allocation8 + $0x180] sm:$0xff]
    %v776 = vld [vmem:[#allocation8 + $0x188] sm:$0xff]
    %v777 = vld [vmem:[#allocation8 + $0x190] sm:$0xff]
    %v778 = vld [vmem:[#allocation8 + $0x198] sm:$0xff]
    %v779 = vld [vmem:[#allocation8 + $0x1a0] sm:$0xff]
    %v780 = vld [vmem:[#allocation8 + $0x1a8] sm:$0xff]
    %v781 = vld [vmem:[#allocation8 + $0x1b0] sm:$0xff]
    %v782 = vld [vmem:[#allocation8 + $0x1b8] sm:$0xff]
    %v783 = vld [vmem:[#allocation8 + $0x1c0] sm:$0xff]
    %v784 = vld [vmem:[#allocation8 + $0x1c8] sm:$0xff]
    %v785 = vld [vmem:[#allocation8 + $0x1d0] sm:$0xff]
    %v786 = vld [vmem:[#allocation8 + $0x1d8] sm:$0xff]
    %v787 = vld [vmem:[#allocation8 + $0x1e0] sm:$0xff]
    %v788 = vld [vmem:[#allocation8 + $0x1e8] sm:$0xff]
    %v789 = vld [vmem:[#allocation8 + $0x1f0] sm:$0xff]
    %v790 = vld [vmem:[#allocation8 + $0x1f8] sm:$0xff]
    %v791 = vld [vmem:[#allocation8 + $0x200] sm:$0xff]
    %v792 = vld [vmem:[#allocation8 + $0x208] sm:$0xff]
    %v793 = vld [vmem:[#allocation8 + $0x210] sm:$0xff]
    %v794 = vld [vmem:[#allocation8 + $0x218] sm:$0xff]
    %v795 = vld [vmem:[#allocation8 + $0x220] sm:$0xff]
    %v796 = vld [vmem:[#allocation8 + $0x228] sm:$0xff]
    %v797 = vld [vmem:[#allocation8 + $0x230] sm:$0xff]
    %v798 = vld [vmem:[#allocation8 + $0x238] sm:$0xff]
    %v799 = vld [vmem:[#allocation8 + $0x240] sm:$0xff]
    %v800 = vld [vmem:[#allocation8 + $0x248] sm:$0xff]
    %v801 = vld [vmem:[#allocation8 + $0x250] sm:$0xff]
    %v802 = vld [vmem:[#allocation8 + $0x258] sm:$0xff]
    %v803 = vld [vmem:[#allocation8 + $0x260] sm:$0xff]
    %v804 = vld [vmem:[#allocation8 + $0x268] sm:$0xff]
    %v805 = vld [vmem:[#allocation8 + $0x270] sm:$0xff]
    %v806 = vld [vmem:[#allocation8 + $0x278] sm:$0xff]
    %v807 = vld [vmem:[#allocation8 + $0x280] sm:$0xff]
    %v808 = vld [vmem:[#allocation8 + $0x288] sm:$0xff]
    %v809 = vld [vmem:[#allocation8 + $0x290] sm:$0xff]
    %v810 = vld [vmem:[#allocation8 + $0x298] sm:$0xff]
    %v811 = vld [vmem:[#allocation8 + $0x2a0] sm:$0xff]
    %v812 = vld [vmem:[#allocation8 + $0x2a8] sm:$0xff]
    %v813 = vld [vmem:[#allocation8 + $0x2b0] sm:$0xff]
    %v814 = vld [vmem:[#allocation8 + $0x2b8] sm:$0xff]
    %v815 = vld [vmem:[#allocation8 + $0x2c0] sm:$0xff]
    %v816 = vld [vmem:[#allocation8 + $0x2c8] sm:$0xff]
    %v817 = vld [vmem:[#allocation8 + $0x2d0] sm:$0xff]
    %v818 = vld [vmem:[#allocation8 + $0x2d8] sm:$0xff]
    %v819 = vld [vmem:[#allocation8 + $0x2e0] sm:$0xff]
    %v820 = vld [vmem:[#allocation8 + $0x2e8] sm:$0xff]
    %v821 = vld [vmem:[#allocation8 + $0x2f0] sm:$0xff]
    %v822 = vld [vmem:[#allocation8 + $0x2f8] sm:$0xff]
    %v823 = vld [vmem:[#allocation8 + $0x300] sm:$0xff]
    %v824 = vld [vmem:[#allocation8 + $0x308] sm:$0xff]
    %v825 = vld [vmem:[#allocation8 + $0x310] sm:$0xff]
    %v826 = vld [vmem:[#allocation8 + $0x318] sm:$0xff]
    %v827 = vld [vmem:[#allocation8 + $0x320] sm:$0xff]
    %v828 = vld [vmem:[#allocation8 + $0x328] sm:$0xff]
    %v829 = vld [vmem:[#allocation8 + $0x330] sm:$0xff]
    %v830 = vld [vmem:[#allocation8 + $0x338] sm:$0xff]
    %v831 = vld [vmem:[#allocation8 + $0x340] sm:$0xff]
    %v832 = vld [vmem:[#allocation8 + $0x348] sm:$0xff]
    %v833 = vld [vmem:[#allocation8 + $0x350] sm:$0xff]
    %v834 = vld [vmem:[#allocation8 + $0x358] sm:$0xff]
    %v835 = vld [vmem:[#allocation8 + $0x360] sm:$0xff]
    %v836 = vld [vmem:[#allocation8 + $0x368] sm:$0xff]
    %v837 = vld [vmem:[#allocation8 + $0x370] sm:$0xff]
    %v838 = vld [vmem:[#allocation8 + $0x378] sm:$0xff]
    %v839 = vld [vmem:[#allocation8 + $0x380] sm:$0xff]
    %v840 = vld [vmem:[#allocation8 + $0x388] sm:$0xff]
    %v841 = vld [vmem:[#allocation8 + $0x390] sm:$0xff]
    %v842 = vld [vmem:[#allocation8 + $0x398] sm:$0xff]
    %v843 = vld [vmem:[#allocation8 + $0x3a0] sm:$0xff]
    %v844 = vld [vmem:[#allocation8 + $0x3a8] sm:$0xff]
    %v845 = vld [vmem:[#allocation8 + $0x3b0] sm:$0xff]
    %v846 = vld [vmem:[#allocation8 + $0x3b8] sm:$0xff]
    %v847 = vld [vmem:[#allocation8 + $0x3c0] sm:$0xff]
    %v848 = vld [vmem:[#allocation8 + $0x3c8] sm:$0xff]
    %v849 = vld [vmem:[#allocation8 + $0x3d0] sm:$0xff]
    %v850 = vld [vmem:[#allocation8 + $0x3d8] sm:$0xff]
    %v851 = vld [vmem:[#allocation8 + $0x3e0] sm:$0xff]
    %v852 = vld [vmem:[#allocation8 + $0x3e8] sm:$0xff]
    %v853 = vld [vmem:[#allocation8 + $0x3f0] sm:$0xff]
    %v854 = vld [vmem:[#allocation8 + $0x3f8] sm:$0xff]
    %v855 = vld [vmem:[%s5] sm:$0xf]
    %v857 = vperm.slane %v855, 0
    %v858 = vperm.slane %v855, 1
    %v859 = vperm.slane %v855, 2
    %v860 = vperm.slane %v855, 3
    %v993 = vunpack.c.l.b16 %v727
    %v994 = vunpack.c.h.b16 %v727
    %v995 = vunpack.c.l.b16 %v728
    %v996 = vunpack.c.h.b16 %v728
    %v997 = vunpack.c.l.b16 %v729
    %v998 = vunpack.c.h.b16 %v729
    %v999 = vunpack.c.l.b16 %v730
    %v1000 = vunpack.c.h.b16 %v730
    %v1001 = vunpack.c.l.b16 %v731
    %v1002 = vunpack.c.h.b16 %v731
    %v1003 = vunpack.c.l.b16 %v732
    %v1004 = vunpack.c.h.b16 %v732
    %v1005 = vunpack.c.l.b16 %v733
    %v1006 = vunpack.c.h.b16 %v733
    %v1007 = vunpack.c.l.b16 %v734
    %v1008 = vunpack.c.h.b16 %v734
    %v1009 = vunpack.c.l.b16 %v735
    %v1010 = vunpack.c.h.b16 %v735
    %v1011 = vunpack.c.l.b16 %v736
    %v1012 = vunpack.c.h.b16 %v736
    %v1013 = vunpack.c.l.b16 %v737
    %v1014 = vunpack.c.h.b16 %v737
    %v1015 = vunpack.c.l.b16 %v738
    %v1016 = vunpack.c.h.b16 %v738
    %v1017 = vunpack.c.l.b16 %v739
    %v1018 = vunpack.c.h.b16 %v739
    %v1019 = vunpack.c.l.b16 %v740
    %v1020 = vunpack.c.h.b16 %v740
    %v1021 = vunpack.c.l.b16 %v741
    %v1022 = vunpack.c.h.b16 %v741
    %v1023 = vunpack.c.l.b16 %v742
    %v1024 = vunpack.c.h.b16 %v742
    %v1025 = vunpack.c.l.b16 %v743
    %v1026 = vunpack.c.h.b16 %v743
    %v1027 = vunpack.c.l.b16 %v744
    %v1028 = vunpack.c.h.b16 %v744
    %v1029 = vunpack.c.l.b16 %v745
    %v1030 = vunpack.c.h.b16 %v745
    %v1031 = vunpack.c.l.b16 %v746
    %v1032 = vunpack.c.h.b16 %v746
    %v1033 = vunpack.c.l.b16 %v747
    %v1034 = vunpack.c.h.b16 %v747
    %v1035 = vunpack.c.l.b16 %v748
    %v1036 = vunpack.c.h.b16 %v748
    %v1037 = vunpack.c.l.b16 %v749
    %v1038 = vunpack.c.h.b16 %v749
    %v1039 = vunpack.c.l.b16 %v750
    %v1040 = vunpack.c.h.b16 %v750
    %v1041 = vunpack.c.l.b16 %v751
    %v1042 = vunpack.c.h.b16 %v751
    %v1043 = vunpack.c.l.b16 %v752
    %v1044 = vunpack.c.h.b16 %v752
    %v1045 = vunpack.c.l.b16 %v753
    %v1046 = vunpack.c.h.b16 %v753
    %v1047 = vunpack.c.l.b16 %v754
    %v1048 = vunpack.c.h.b16 %v754
    %v1049 = vunpack.c.l.b16 %v755
    %v1050 = vunpack.c.h.b16 %v755
    %v1051 = vunpack.c.l.b16 %v756
    %v1052 = vunpack.c.h.b16 %v756
    %v1053 = vunpack.c.l.b16 %v757
    %v1054 = vunpack.c.h.b16 %v757
    %v1055 = vunpack.c.l.b16 %v758
    %v1056 = vunpack.c.h.b16 %v758
    %v1057 = vunpack.c.l.b16 %v759
    %v1058 = vunpack.c.h.b16 %v759
    %v1059 = vunpack.c.l.b16 %v760
    %v1060 = vunpack.c.h.b16 %v760
    %v1061 = vunpack.c.l.b16 %v761
    %v1062 = vunpack.c.h.b16 %v761
    %v1063 = vunpack.c.l.b16 %v762
    %v1064 = vunpack.c.h.b16 %v762
    %v1065 = vunpack.c.l.b16 %v763
    %v1066 = vunpack.c.h.b16 %v763
    %v1067 = vunpack.c.l.b16 %v764
    %v1068 = vunpack.c.h.b16 %v764
    %v1069 = vunpack.c.l.b16 %v765
    %v1070 = vunpack.c.h.b16 %v765
    %v1071 = vunpack.c.l.b16 %v766
    %v1072 = vunpack.c.h.b16 %v766
    %v1073 = vunpack.c.l.b16 %v767
    %v1074 = vunpack.c.h.b16 %v767
    %v1075 = vunpack.c.l.b16 %v768
    %v1076 = vunpack.c.h.b16 %v768
    %v1077 = vunpack.c.l.b16 %v769
    %v1078 = vunpack.c.h.b16 %v769
    %v1079 = vunpack.c.l.b16 %v770
    %v1080 = vunpack.c.h.b16 %v770
    %v1081 = vunpack.c.l.b16 %v771
    %v1082 = vunpack.c.h.b16 %v771
    %v1083 = vunpack.c.l.b16 %v772
    %v1084 = vunpack.c.h.b16 %v772
    %v1085 = vunpack.c.l.b16 %v773
    %v1086 = vunpack.c.h.b16 %v773
    %v1087 = vunpack.c.l.b16 %v774
    %v1088 = vunpack.c.h.b16 %v774
    %v1089 = vunpack.c.l.b16 %v775
    %v1090 = vunpack.c.h.b16 %v775
    %v1091 = vunpack.c.l.b16 %v776
    %v1092 = vunpack.c.h.b16 %v776
    %v1093 = vunpack.c.l.b16 %v777
    %v1094 = vunpack.c.h.b16 %v777
    %v1095 = vunpack.c.l.b16 %v778
    %v1096 = vunpack.c.h.b16 %v778
    %v1097 = vunpack.c.l.b16 %v779
    %v1098 = vunpack.c.h.b16 %v779
    %v1099 = vunpack.c.l.b16 %v780
    %v1100 = vunpack.c.h.b16 %v780
    %v1101 = vunpack.c.l.b16 %v781
    %v1102 = vunpack.c.h.b16 %v781
    %v1103 = vunpack.c.l.b16 %v782
    %v1104 = vunpack.c.h.b16 %v782
    %v1105 = vunpack.c.l.b16 %v783
    %v1106 = vunpack.c.h.b16 %v783
    %v1107 = vunpack.c.l.b16 %v784
    %v1108 = vunpack.c.h.b16 %v784
    %v1109 = vunpack.c.l.b16 %v785
    %v1110 = vunpack.c.h.b16 %v785
    %v1111 = vunpack.c.l.b16 %v786
    %v1112 = vunpack.c.h.b16 %v786
    %v1113 = vunpack.c.l.b16 %v787
    %v1114 = vunpack.c.h.b16 %v787
    %v1115 = vunpack.c.l.b16 %v788
    %v1116 = vunpack.c.h.b16 %v788
    %v1117 = vunpack.c.l.b16 %v789
    %v1118 = vunpack.c.h.b16 %v789
    %v1119 = vunpack.c.l.b16 %v790
    %v1120 = vunpack.c.h.b16 %v790
    %v1121 = vunpack.c.l.b16 %v791
    %v1122 = vunpack.c.h.b16 %v791
    %v1123 = vunpack.c.l.b16 %v792
    %v1124 = vunpack.c.h.b16 %v792
    %v1125 = vunpack.c.l.b16 %v793
    %v1126 = vunpack.c.h.b16 %v793
    %v1127 = vunpack.c.l.b16 %v794
    %v1128 = vunpack.c.h.b16 %v794
    %v1129 = vunpack.c.l.b16 %v795
    %v1130 = vunpack.c.h.b16 %v795
    %v1131 = vunpack.c.l.b16 %v796
    %v1132 = vunpack.c.h.b16 %v796
    %v1133 = vunpack.c.l.b16 %v797
    %v1134 = vunpack.c.h.b16 %v797
    %v1135 = vunpack.c.l.b16 %v798
    %v1136 = vunpack.c.h.b16 %v798
    %v1137 = vunpack.c.l.b16 %v799
    %v1138 = vunpack.c.h.b16 %v799
    %v1139 = vunpack.c.l.b16 %v800
    %v1140 = vunpack.c.h.b16 %v800
    %v1141 = vunpack.c.l.b16 %v801
    %v1142 = vunpack.c.h.b16 %v801
    %v1143 = vunpack.c.l.b16 %v802
    %v1144 = vunpack.c.h.b16 %v802
    %v1145 = vunpack.c.l.b16 %v803
    %v1146 = vunpack.c.h.b16 %v803
    %v1147 = vunpack.c.l.b16 %v804
    %v1148 = vunpack.c.h.b16 %v804
    %v1149 = vunpack.c.l.b16 %v805
    %v1150 = vunpack.c.h.b16 %v805
    %v1151 = vunpack.c.l.b16 %v806
    %v1152 = vunpack.c.h.b16 %v806
    %v1153 = vunpack.c.l.b16 %v807
    %v1154 = vunpack.c.h.b16 %v807
    %v1155 = vunpack.c.l.b16 %v808
    %v1156 = vunpack.c.h.b16 %v808
    %v1157 = vunpack.c.l.b16 %v809
    %v1158 = vunpack.c.h.b16 %v809
    %v1159 = vunpack.c.l.b16 %v810
    %v1160 = vunpack.c.h.b16 %v810
    %v1161 = vunpack.c.l.b16 %v811
    %v1162 = vunpack.c.h.b16 %v811
    %v1163 = vunpack.c.l.b16 %v812
    %v1164 = vunpack.c.h.b16 %v812
    %v1165 = vunpack.c.l.b16 %v813
    %v1166 = vunpack.c.h.b16 %v813
    %v1167 = vunpack.c.l.b16 %v814
    %v1168 = vunpack.c.h.b16 %v814
    %v1169 = vunpack.c.l.b16 %v815
    %v1170 = vunpack.c.h.b16 %v815
    %v1171 = vunpack.c.l.b16 %v816
    %v1172 = vunpack.c.h.b16 %v816
    %v1173 = vunpack.c.l.b16 %v817
    %v1174 = vunpack.c.h.b16 %v817
    %v1175 = vunpack.c.l.b16 %v818
    %v1176 = vunpack.c.h.b16 %v818
    %v1177 = vunpack.c.l.b16 %v819
    %v1178 = vunpack.c.h.b16 %v819
    %v1179 = vunpack.c.l.b16 %v820
    %v1180 = vunpack.c.h.b16 %v820
    %v1181 = vunpack.c.l.b16 %v821
    %v1182 = vunpack.c.h.b16 %v821
    %v1183 = vunpack.c.l.b16 %v822
    %v1184 = vunpack.c.h.b16 %v822
    %v1185 = vunpack.c.l.b16 %v823
    %v1186 = vunpack.c.h.b16 %v823
    %v1187 = vunpack.c.l.b16 %v824
    %v1188 = vunpack.c.h.b16 %v824
    %v1189 = vunpack.c.l.b16 %v825
    %v1190 = vunpack.c.h.b16 %v825
    %v1191 = vunpack.c.l.b16 %v826
    %v1192 = vunpack.c.h.b16 %v826
    %v1193 = vunpack.c.l.b16 %v827
    %v1194 = vunpack.c.h.b16 %v827
    %v1195 = vunpack.c.l.b16 %v828
    %v1196 = vunpack.c.h.b16 %v828
    %v1197 = vunpack.c.l.b16 %v829
    %v1198 = vunpack.c.h.b16 %v829
    %v1199 = vunpack.c.l.b16 %v830
    %v1200 = vunpack.c.h.b16 %v830
    %v1201 = vunpack.c.l.b16 %v831
    %v1202 = vunpack.c.h.b16 %v831
    %v1203 = vunpack.c.l.b16 %v832
    %v1204 = vunpack.c.h.b16 %v832
    %v1205 = vunpack.c.l.b16 %v833
    %v1206 = vunpack.c.h.b16 %v833
    %v1207 = vunpack.c.l.b16 %v834
    %v1208 = vunpack.c.h.b16 %v834
    %v1209 = vunpack.c.l.b16 %v835
    %v1210 = vunpack.c.h.b16 %v835
    %v1211 = vunpack.c.l.b16 %v836
    %v1212 = vunpack.c.h.b16 %v836
    %v1213 = vunpack.c.l.b16 %v837
    %v1214 = vunpack.c.h.b16 %v837
    %v1215 = vunpack.c.l.b16 %v838
    %v1216 = vunpack.c.h.b16 %v838
    %v1217 = vunpack.c.l.b16 %v839
    %v1218 = vunpack.c.h.b16 %v839
    %v1219 = vunpack.c.l.b16 %v840
    %v1220 = vunpack.c.h.b16 %v840
    %v1221 = vunpack.c.l.b16 %v841
    %v1222 = vunpack.c.h.b16 %v841
    %v1223 = vunpack.c.l.b16 %v842
    %v1224 = vunpack.c.h.b16 %v842
    %v1225 = vunpack.c.l.b16 %v843
    %v1226 = vunpack.c.h.b16 %v843
    %v1227 = vunpack.c.l.b16 %v844
    %v1228 = vunpack.c.h.b16 %v844
    %v1229 = vunpack.c.l.b16 %v845
    %v1230 = vunpack.c.h.b16 %v845
    %v1231 = vunpack.c.l.b16 %v846
    %v1232 = vunpack.c.h.b16 %v846
    %v1233 = vunpack.c.l.b16 %v847
    %v1234 = vunpack.c.h.b16 %v847
    %v1235 = vunpack.c.l.b16 %v848
    %v1236 = vunpack.c.h.b16 %v848
    %v1237 = vunpack.c.l.b16 %v849
    %v1238 = vunpack.c.h.b16 %v849
    %v1239 = vunpack.c.l.b16 %v850
    %v1240 = vunpack.c.h.b16 %v850
    %v1241 = vunpack.c.l.b16 %v851
    %v1242 = vunpack.c.h.b16 %v851
    %v1243 = vunpack.c.l.b16 %v852
    %v1244 = vunpack.c.h.b16 %v852
    %v1245 = vunpack.c.l.b16 %v853
    %v1246 = vunpack.c.h.b16 %v853
    %v1247 = vunpack.c.l.b16 %v854
    %v1248 = vunpack.c.h.b16 %v854
    %v1249 = vpack.c.b16 %v997, %v993
    %v1250 = vpack.c.b16 %v998, %v994
    %v1251 = vpack.c.b16 %v999, %v995
    %v1252 = vpack.c.b16 %v1000, %v996
    %v1253 = vpack.c.b16 %v1005, %v1001
    %v1254 = vpack.c.b16 %v1006, %v1002
    %v1255 = vpack.c.b16 %v1007, %v1003
    %v1256 = vpack.c.b16 %v1008, %v1004
    %v1257 = vpack.c.b16 %v1013, %v1009
    %v1258 = vpack.c.b16 %v1014, %v1010
    %v1259 = vpack.c.b16 %v1015, %v1011
    %v1260 = vpack.c.b16 %v1016, %v1012
    %v1261 = vpack.c.b16 %v1021, %v1017
    %v1262 = vpack.c.b16 %v1022, %v1018
    %v1263 = vpack.c.b16 %v1023, %v1019
    %v1264 = vpack.c.b16 %v1024, %v1020
    %v1265 = vpack.c.b16 %v1029, %v1025
    %v1266 = vpack.c.b16 %v1030, %v1026
    %v1267 = vpack.c.b16 %v1031, %v1027
    %v1268 = vpack.c.b16 %v1032, %v1028
    %v1269 = vpack.c.b16 %v1037, %v1033
    %v1270 = vpack.c.b16 %v1038, %v1034
    %v1271 = vpack.c.b16 %v1039, %v1035
    %v1272 = vpack.c.b16 %v1040, %v1036
    %v1273 = vpack.c.b16 %v1045, %v1041
    %v1274 = vpack.c.b16 %v1046, %v1042
    %v1275 = vpack.c.b16 %v1047, %v1043
    %v1276 = vpack.c.b16 %v1048, %v1044
    %v1277 = vpack.c.b16 %v1053, %v1049
    %v1278 = vpack.c.b16 %v1054, %v1050
    %v1279 = vpack.c.b16 %v1055, %v1051
    %v1280 = vpack.c.b16 %v1056, %v1052
    %v1281 = vpack.c.b16 %v1061, %v1057
    %v1282 = vpack.c.b16 %v1062, %v1058
    %v1283 = vpack.c.b16 %v1063, %v1059
    %v1284 = vpack.c.b16 %v1064, %v1060
    %v1285 = vpack.c.b16 %v1069, %v1065
    %v1286 = vpack.c.b16 %v1070, %v1066
    %v1287 = vpack.c.b16 %v1071, %v1067
    %v1288 = vpack.c.b16 %v1072, %v1068
    %v1289 = vpack.c.b16 %v1077, %v1073
    %v1290 = vpack.c.b16 %v1078, %v1074
    %v1291 = vpack.c.b16 %v1079, %v1075
    %v1292 = vpack.c.b16 %v1080, %v1076
    %v1293 = vpack.c.b16 %v1085, %v1081
    %v1294 = vpack.c.b16 %v1086, %v1082
    %v1295 = vpack.c.b16 %v1087, %v1083
    %v1296 = vpack.c.b16 %v1088, %v1084
    %v1297 = vpack.c.b16 %v1093, %v1089
    %v1298 = vpack.c.b16 %v1094, %v1090
    %v1299 = vpack.c.b16 %v1095, %v1091
    %v1300 = vpack.c.b16 %v1096, %v1092
    %v1301 = vpack.c.b16 %v1101, %v1097
    %v1302 = vpack.c.b16 %v1102, %v1098
    %v1303 = vpack.c.b16 %v1103, %v1099
    %v1304 = vpack.c.b16 %v1104, %v1100
    %v1305 = vpack.c.b16 %v1109, %v1105
    %v1306 = vpack.c.b16 %v1110, %v1106
    %v1307 = vpack.c.b16 %v1111, %v1107
    %v1308 = vpack.c.b16 %v1112, %v1108
    %v1309 = vpack.c.b16 %v1117, %v1113
    %v1310 = vpack.c.b16 %v1118, %v1114
    %v1311 = vpack.c.b16 %v1119, %v1115
    %v1312 = vpack.c.b16 %v1120, %v1116
    %v1313 = vpack.c.b16 %v1125, %v1121
    %v1314 = vpack.c.b16 %v1126, %v1122
    %v1315 = vpack.c.b16 %v1127, %v1123
    %v1316 = vpack.c.b16 %v1128, %v1124
    %v1317 = vpack.c.b16 %v1133, %v1129
    %v1318 = vpack.c.b16 %v1134, %v1130
    %v1319 = vpack.c.b16 %v1135, %v1131
    %v1320 = vpack.c.b16 %v1136, %v1132
    %v1321 = vpack.c.b16 %v1141, %v1137
    %v1322 = vpack.c.b16 %v1142, %v1138
    %v1323 = vpack.c.b16 %v1143, %v1139
    %v1324 = vpack.c.b16 %v1144, %v1140
    %v1325 = vpack.c.b16 %v1149, %v1145
    %v1326 = vpack.c.b16 %v1150, %v1146
    %v1327 = vpack.c.b16 %v1151, %v1147
    %v1328 = vpack.c.b16 %v1152, %v1148
    %v1329 = vpack.c.b16 %v1157, %v1153
    %v1330 = vpack.c.b16 %v1158, %v1154
    %v1331 = vpack.c.b16 %v1159, %v1155
    %v1332 = vpack.c.b16 %v1160, %v1156
    %v1333 = vpack.c.b16 %v1165, %v1161
    %v1334 = vpack.c.b16 %v1166, %v1162
    %v1335 = vpack.c.b16 %v1167, %v1163
    %v1336 = vpack.c.b16 %v1168, %v1164
    %v1337 = vpack.c.b16 %v1173, %v1169
    %v1338 = vpack.c.b16 %v1174, %v1170
    %v1339 = vpack.c.b16 %v1175, %v1171
    %v1340 = vpack.c.b16 %v1176, %v1172
    %v1341 = vpack.c.b16 %v1181, %v1177
    %v1342 = vpack.c.b16 %v1182, %v1178
    %v1343 = vpack.c.b16 %v1183, %v1179
    %v1344 = vpack.c.b16 %v1184, %v1180
    %v1345 = vpack.c.b16 %v1189, %v1185
    %v1346 = vpack.c.b16 %v1190, %v1186
    %v1347 = vpack.c.b16 %v1191, %v1187
    %v1348 = vpack.c.b16 %v1192, %v1188
    %v1349 = vpack.c.b16 %v1197, %v1193
    %v1350 = vpack.c.b16 %v1198, %v1194
    %v1351 = vpack.c.b16 %v1199, %v1195
    %v1352 = vpack.c.b16 %v1200, %v1196
    %v1353 = vpack.c.b16 %v1205, %v1201
    %v1354 = vpack.c.b16 %v1206, %v1202
    %v1355 = vpack.c.b16 %v1207, %v1203
    %v1356 = vpack.c.b16 %v1208, %v1204
    %v1357 = vpack.c.b16 %v1213, %v1209
    %v1358 = vpack.c.b16 %v1214, %v1210
    %v1359 = vpack.c.b16 %v1215, %v1211
    %v1360 = vpack.c.b16 %v1216, %v1212
    %v1361 = vpack.c.b16 %v1221, %v1217
    %v1362 = vpack.c.b16 %v1222, %v1218
    %v1363 = vpack.c.b16 %v1223, %v1219
    %v1364 = vpack.c.b16 %v1224, %v1220
    %v1365 = vpack.c.b16 %v1229, %v1225
    %v1366 = vpack.c.b16 %v1230, %v1226
    %v1367 = vpack.c.b16 %v1231, %v1227
    %v1368 = vpack.c.b16 %v1232, %v1228
    %v1369 = vpack.c.b16 %v1237, %v1233
    %v1370 = vpack.c.b16 %v1238, %v1234
    %v1371 = vpack.c.b16 %v1239, %v1235
    %v1372 = vpack.c.b16 %v1240, %v1236
    %v1373 = vpack.c.b16 %v1245, %v1241
    %v1374 = vpack.c.b16 %v1246, %v1242
    %v1375 = vpack.c.b16 %v1247, %v1243
    %v1376 = vpack.c.b16 %v1248, %v1244
    %1505 = vmatpush.bf16.msra.mxu0 %v1277
    %1506 = vmatpush.bf16.msra.mxu0 %v1273
    %1507 = vmatpush.bf16.msra.mxu0 %v1269
    %1508 = vmatpush.bf16.msra.mxu0 %v1265
    %1509 = vmatpush.bf16.msra.mxu0 %v1261
    %1510 = vmatpush.bf16.msra.mxu0 %v1257
    %1511 = vmatpush.bf16.msra.mxu0 %v1253
    %1512 = vmatpush.bf16.msra.mxu0 %v1249
    %1513 = vmatmul.bf16.gmra.mxu0 %v723
    %v1514 = vpop.f32.mrf.mxu0
    %v1515 = vadd.f32 %v857, %v1514
    %v1516 = vpop.f32.mrf.mxu0
    %1517 = vdwg.mxu0
    %1518 = vmatpush.bf16.msra.mxu0 %v1309
    %1519 = vmatpush.bf16.msra.mxu0 %v1305
    %1520 = vmatpush.bf16.msra.mxu0 %v1301
    %1521 = vmatpush.bf16.msra.mxu0 %v1297
    %1522 = vmatpush.bf16.msra.mxu0 %v1293
    %1523 = vmatpush.bf16.msra.mxu0 %v1289
    %1524 = vmatpush.bf16.msra.mxu0 %v1285
    %1525 = vmatpush.bf16.msra.mxu0 %v1281
    %1526 = vmatmul.bf16.gmra.mxu0 %v724
    %v1527 = vpop.f32.mrf.mxu0
    %v1528 = vadd.f32 %v1515, %v1527
    %v1529 = vpop.f32.mrf.mxu0
    %1530 = vdwg.mxu0
    %1531 = vmatpush.bf16.msra.mxu0 %v1341
    %1532 = vmatpush.bf16.msra.mxu0 %v1337
    %1533 = vmatpush.bf16.msra.mxu0 %v1333
    %1534 = vmatpush.bf16.msra.mxu0 %v1329
    %1535 = vmatpush.bf16.msra.mxu0 %v1325
    %1536 = vmatpush.bf16.msra.mxu0 %v1321
    %1537 = vmatpush.bf16.msra.mxu0 %v1317
    %1538 = vmatpush.bf16.msra.mxu0 %v1313
    %1539 = vmatmul.bf16.gmra.mxu0 %v725
    %v1540 = vpop.f32.mrf.mxu0
    %v1541 = vadd.f32 %v1528, %v1540
    %v1542 = vpop.f32.mrf.mxu0
    %1543 = vdwg.mxu0
    %1544 = vmatpush.bf16.msra.mxu0 %v1373
    %1545 = vmatpush.bf16.msra.mxu0 %v1369
    %1546 = vmatpush.bf16.msra.mxu0 %v1365
    %1547 = vmatpush.bf16.msra.mxu0 %v1361
    %1548 = vmatpush.bf16.msra.mxu0 %v1357
    %1549 = vmatpush.bf16.msra.mxu0 %v1353
    %1550 = vmatpush.bf16.msra.mxu0 %v1349
    %1551 = vmatpush.bf16.msra.mxu0 %v1345
    %1552 = vmatmul.bf16.gmra.mxu0 %v726
    %v1553 = vpop.f32.mrf.mxu0
    %v1554 = vadd.f32 %v1541, %v1553
    %v1555 = vpop.f32.mrf.mxu0
    %1556 = vdwg.mxu0
    %1557 = vmatpush.bf16.msra.mxu0 %v1278
    %1558 = vmatpush.bf16.msra.mxu0 %v1274
    %1559 = vmatpush.bf16.msra.mxu0 %v1270
    %1560 = vmatpush.bf16.msra.mxu0 %v1266
    %1561 = vmatpush.bf16.msra.mxu0 %v1262
    %1562 = vmatpush.bf16.msra.mxu0 %v1258
    %1563 = vmatpush.bf16.msra.mxu0 %v1254
    %1564 = vmatpush.bf16.msra.mxu0 %v1250
    %1565 = vmatmul.bf16.gmra.mxu0 %v723
    %v1566 = vpop.f32.mrf.mxu0
    %v1567 = vadd.f32 %v858, %v1566
    %v1568 = vpop.f32.mrf.mxu0
    %1569 = vdwg.mxu0
    %1570 = vmatpush.bf16.msra.mxu0 %v1310
    %1571 = vmatpush.bf16.msra.mxu0 %v1306
    %1572 = vmatpush.bf16.msra.mxu0 %v1302
    %1573 = vmatpush.bf16.msra.mxu0 %v1298
    %1574 = vmatpush.bf16.msra.mxu0 %v1294
    %1575 = vmatpush.bf16.msra.mxu0 %v1290
    %1576 = vmatpush.bf16.msra.mxu0 %v1286
    %1577 = vmatpush.bf16.msra.mxu0 %v1282
    %1578 = vmatmul.bf16.gmra.mxu0 %v724
    %v1579 = vpop.f32.mrf.mxu0
    %v1580 = vadd.f32 %v1567, %v1579
    %v1581 = vpop.f32.mrf.mxu0
    %1582 = vdwg.mxu0
    %1583 = vmatpush.bf16.msra.mxu0 %v1342
    %1584 = vmatpush.bf16.msra.mxu0 %v1338
    %1585 = vmatpush.bf16.msra.mxu0 %v1334
    %1586 = vmatpush.bf16.msra.mxu0 %v1330
    %1587 = vmatpush.bf16.msra.mxu0 %v1326
    %1588 = vmatpush.bf16.msra.mxu0 %v1322
    %1589 = vmatpush.bf16.msra.mxu0 %v1318
    %1590 = vmatpush.bf16.msra.mxu0 %v1314
    %1591 = vmatmul.bf16.gmra.mxu0 %v725
    %v1592 = vpop.f32.mrf.mxu0
    %v1593 = vadd.f32 %v1580, %v1592
    %v1594 = vpop.f32.mrf.mxu0
    %1595 = vdwg.mxu0
    %1596 = vmatpush.bf16.msra.mxu0 %v1374
    %1597 = vmatpush.bf16.msra.mxu0 %v1370
    %1598 = vmatpush.bf16.msra.mxu0 %v1366
    %1599 = vmatpush.bf16.msra.mxu0 %v1362
    %1600 = vmatpush.bf16.msra.mxu0 %v1358
    %1601 = vmatpush.bf16.msra.mxu0 %v1354
    %1602 = vmatpush.bf16.msra.mxu0 %v1350
    %1603 = vmatpush.bf16.msra.mxu0 %v1346
    %1604 = vmatmul.bf16.gmra.mxu0 %v726
    %v1605 = vpop.f32.mrf.mxu0
    %v1606 = vadd.f32 %v1593, %v1605
    %v1607 = vpop.f32.mrf.mxu0
    %1608 = vdwg.mxu0
    %1609 = vmatpush.bf16.msra.mxu0 %v1279
    %1610 = vmatpush.bf16.msra.mxu0 %v1275
    %1611 = vmatpush.bf16.msra.mxu0 %v1271
    %1612 = vmatpush.bf16.msra.mxu0 %v1267
    %1613 = vmatpush.bf16.msra.mxu0 %v1263
    %1614 = vmatpush.bf16.msra.mxu0 %v1259
    %1615 = vmatpush.bf16.msra.mxu0 %v1255
    %1616 = vmatpush.bf16.msra.mxu0 %v1251
    %1617 = vmatmul.bf16.gmra.mxu0 %v723
    %v1618 = vpop.f32.mrf.mxu0
    %v1619 = vadd.f32 %v859, %v1618
    %v1620 = vpop.f32.mrf.mxu0
    %1621 = vdwg.mxu0
    %1622 = vmatpush.bf16.msra.mxu0 %v1311
    %1623 = vmatpush.bf16.msra.mxu0 %v1307
    %1624 = vmatpush.bf16.msra.mxu0 %v1303
    %1625 = vmatpush.bf16.msra.mxu0 %v1299
    %1626 = vmatpush.bf16.msra.mxu0 %v1295
    %1627 = vmatpush.bf16.msra.mxu0 %v1291
    %1628 = vmatpush.bf16.msra.mxu0 %v1287
    %1629 = vmatpush.bf16.msra.mxu0 %v1283
    %1630 = vmatmul.bf16.gmra.mxu0 %v724
    %v1631 = vpop.f32.mrf.mxu0
    %v1632 = vadd.f32 %v1619, %v1631
    %v1633 = vpop.f32.mrf.mxu0
    %1634 = vdwg.mxu0
    %1635 = vmatpush.bf16.msra.mxu0 %v1343
    %1636 = vmatpush.bf16.msra.mxu0 %v1339
    %1637 = vmatpush.bf16.msra.mxu0 %v1335
    %1638 = vmatpush.bf16.msra.mxu0 %v1331
    %1639 = vmatpush.bf16.msra.mxu0 %v1327
    %1640 = vmatpush.bf16.msra.mxu0 %v1323
    %1641 = vmatpush.bf16.msra.mxu0 %v1319
    %1642 = vmatpush.bf16.msra.mxu0 %v1315
    %1643 = vmatmul.bf16.gmra.mxu0 %v725
    %v1644 = vpop.f32.mrf.mxu0
    %v1645 = vadd.f32 %v1632, %v1644
    %v1646 = vpop.f32.mrf.mxu0
    %1647 = vdwg.mxu0
    %1648 = vmatpush.bf16.msra.mxu0 %v1375
    %1649 = vmatpush.bf16.msra.mxu0 %v1371
    %1650 = vmatpush.bf16.msra.mxu0 %v1367
    %1651 = vmatpush.bf16.msra.mxu0 %v1363
    %1652 = vmatpush.bf16.msra.mxu0 %v1359
    %1653 = vmatpush.bf16.msra.mxu0 %v1355
    %1654 = vmatpush.bf16.msra.mxu0 %v1351
    %1655 = vmatpush.bf16.msra.mxu0 %v1347
    %1656 = vmatmul.bf16.gmra.mxu0 %v726
    %v1657 = vpop.f32.mrf.mxu0
    %v1658 = vadd.f32 %v1645, %v1657
    %v1659 = vpop.f32.mrf.mxu0
    %1660 = vdwg.mxu0
    %1661 = vmatpush.bf16.msra.mxu0 %v1280
    %1662 = vmatpush.bf16.msra.mxu0 %v1276
    %1663 = vmatpush.bf16.msra.mxu0 %v1272
    %1664 = vmatpush.bf16.msra.mxu0 %v1268
    %1665 = vmatpush.bf16.msra.mxu0 %v1264
    %1666 = vmatpush.bf16.msra.mxu0 %v1260
    %1667 = vmatpush.bf16.msra.mxu0 %v1256
    %1668 = vmatpush.bf16.msra.mxu0 %v1252
    %1669 = vmatmul.bf16.gmra.mxu0 %v723
    %v1670 = vpop.f32.mrf.mxu0
    %v1671 = vadd.f32 %v860, %v1670
    %v1672 = vpop.f32.mrf.mxu0
    %1673 = vdwg.mxu0
    %1674 = vmatpush.bf16.msra.mxu0 %v1312
    %1675 = vmatpush.bf16.msra.mxu0 %v1308
    %1676 = vmatpush.bf16.msra.mxu0 %v1304
    %1677 = vmatpush.bf16.msra.mxu0 %v1300
    %1678 = vmatpush.bf16.msra.mxu0 %v1296
    %1679 = vmatpush.bf16.msra.mxu0 %v1292
    %1680 = vmatpush.bf16.msra.mxu0 %v1288
    %1681 = vmatpush.bf16.msra.mxu0 %v1284
    %1682 = vmatmul.bf16.gmra.mxu0 %v724
    %v1683 = vpop.f32.mrf.mxu0
    %v1684 = vadd.f32 %v1671, %v1683
    %v1685 = vpop.f32.mrf.mxu0
    %1686 = vdwg.mxu0
    %1687 = vmatpush.bf16.msra.mxu0 %v1344
    %1688 = vmatpush.bf16.msra.mxu0 %v1340
    %1689 = vmatpush.bf16.msra.mxu0 %v1336
    %1690 = vmatpush.bf16.msra.mxu0 %v1332
    %1691 = vmatpush.bf16.msra.mxu0 %v1328
    %1692 = vmatpush.bf16.msra.mxu0 %v1324
    %1693 = vmatpush.bf16.msra.mxu0 %v1320
    %1694 = vmatpush.bf16.msra.mxu0 %v1316
    %1695 = vmatmul.bf16.gmra.mxu0 %v725
    %v1696 = vpop.f32.mrf.mxu0
    %v1697 = vadd.f32 %v1684, %v1696
    %v1698 = vpop.f32.mrf.mxu0
    %1699 = vdwg.mxu0
    %1700 = vmatpush.bf16.msra.mxu0 %v1376
    %1701 = vmatpush.bf16.msra.mxu0 %v1372
    %1702 = vmatpush.bf16.msra.mxu0 %v1368
    %1703 = vmatpush.bf16.msra.mxu0 %v1364
    %1704 = vmatpush.bf16.msra.mxu0 %v1360
    %1705 = vmatpush.bf16.msra.mxu0 %v1356
    %1706 = vmatpush.bf16.msra.mxu0 %v1352
    %1707 = vmatpush.bf16.msra.mxu0 %v1348
    %1708 = vmatmul.bf16.gmra.mxu0 %v726
    %v1709 = vpop.f32.mrf.mxu0
    %v1710 = vadd.f32 %v1697, %v1709
    %v1711 = vpop.f32.mrf.mxu0
    %1712 = vdwg.mxu0
    %vm1713 = vcmp.gt.f32.partialorder %v1554, 0.0
    %vm1714 = vcmp.gt.f32.partialorder %v1606, 0.0
    %vm1715 = vcmp.gt.f32.partialorder %v1658, 0.0
    %vm1716 = vcmp.gt.f32.partialorder %v1710, 0.0
    %v1717 = vmul.f32 %v1554, 0.2
    %v1718 = vmul.f32 %v1606, 0.2
    %v1719 = vmul.f32 %v1658, 0.2
    %v1720 = vmul.f32 %v1710, 0.2
    %v1721 = vsel %vm1713, %v1554, %v1717
    %v1722 = vsel %vm1714, %v1606, %v1718
    %v1723 = vsel %vm1715, %v1658, %v1719
    %v1724 = vsel %vm1716, %v1710, %v1720
    %v1725 = vpack.c.bf16 %v1721, %v1721
    %v1726 = vpack.c.bf16 %v1722, %v1722
    %v1727 = vpack.c.bf16 %v1723, %v1723
    %v1728 = vpack.c.bf16 %v1724, %v1724
    %v1729 = vld [vmem:[#allocation9] sm:$0xff]
    %v1730 = vld [vmem:[#allocation9 + $0x8] sm:$0xff]
    %v1731 = vld [vmem:[#allocation9 + $0x10] sm:$0xff]
    %v1732 = vld [vmem:[#allocation9 + $0x18] sm:$0xff]
    %v1733 = vld [vmem:[#allocation9 + $0x20] sm:$0xff]
    %v1734 = vld [vmem:[#allocation9 + $0x28] sm:$0xff]
    %v1735 = vld [vmem:[#allocation9 + $0x30] sm:$0xff]
    %v1736 = vld [vmem:[#allocation9 + $0x38] sm:$0xff]
    %v1737 = vld [vmem:[#allocation9 + $0x40] sm:$0xff]
    %v1738 = vld [vmem:[#allocation9 + $0x48] sm:$0xff]
    %v1739 = vld [vmem:[#allocation9 + $0x50] sm:$0xff]
    %v1740 = vld [vmem:[#allocation9 + $0x58] sm:$0xff]
    %v1741 = vld [vmem:[#allocation9 + $0x60] sm:$0xff]
    %v1742 = vld [vmem:[#allocation9 + $0x68] sm:$0xff]
    %v1743 = vld [vmem:[#allocation9 + $0x70] sm:$0xff]
    %v1744 = vld [vmem:[#allocation9 + $0x78] sm:$0xff]
    %v1745 = vld [vmem:[#allocation9 + $0x80] sm:$0xff]
    %v1746 = vld [vmem:[#allocation9 + $0x88] sm:$0xff]
    %v1747 = vld [vmem:[#allocation9 + $0x90] sm:$0xff]
    %v1748 = vld [vmem:[#allocation9 + $0x98] sm:$0xff]
    %v1749 = vld [vmem:[#allocation9 + $0xa0] sm:$0xff]
    %v1750 = vld [vmem:[#allocation9 + $0xa8] sm:$0xff]
    %v1751 = vld [vmem:[#allocation9 + $0xb0] sm:$0xff]
    %v1752 = vld [vmem:[#allocation9 + $0xb8] sm:$0xff]
    %v1753 = vld [vmem:[#allocation9 + $0xc0] sm:$0xff]
    %v1754 = vld [vmem:[#allocation9 + $0xc8] sm:$0xff]
    %v1755 = vld [vmem:[#allocation9 + $0xd0] sm:$0xff]
    %v1756 = vld [vmem:[#allocation9 + $0xd8] sm:$0xff]
    %v1757 = vld [vmem:[#allocation9 + $0xe0] sm:$0xff]
    %v1758 = vld [vmem:[#allocation9 + $0xe8] sm:$0xff]
    %v1759 = vld [vmem:[#allocation9 + $0xf0] sm:$0xff]
    %v1760 = vld [vmem:[#allocation9 + $0xf8] sm:$0xff]
    %v1761 = vld [vmem:[#allocation9 + $0x100] sm:$0xff]
    %v1762 = vld [vmem:[#allocation9 + $0x108] sm:$0xff]
    %v1763 = vld [vmem:[#allocation9 + $0x110] sm:$0xff]
    %v1764 = vld [vmem:[#allocation9 + $0x118] sm:$0xff]
    %v1765 = vld [vmem:[#allocation9 + $0x120] sm:$0xff]
    %v1766 = vld [vmem:[#allocation9 + $0x128] sm:$0xff]
    %v1767 = vld [vmem:[#allocation9 + $0x130] sm:$0xff]
    %v1768 = vld [vmem:[#allocation9 + $0x138] sm:$0xff]
    %v1769 = vld [vmem:[#allocation9 + $0x140] sm:$0xff]
    %v1770 = vld [vmem:[#allocation9 + $0x148] sm:$0xff]
    %v1771 = vld [vmem:[#allocation9 + $0x150] sm:$0xff]
    %v1772 = vld [vmem:[#allocation9 + $0x158] sm:$0xff]
    %v1773 = vld [vmem:[#allocation9 + $0x160] sm:$0xff]
    %v1774 = vld [vmem:[#allocation9 + $0x168] sm:$0xff]
    %v1775 = vld [vmem:[#allocation9 + $0x170] sm:$0xff]
    %v1776 = vld [vmem:[#allocation9 + $0x178] sm:$0xff]
    %v1777 = vld [vmem:[#allocation9 + $0x180] sm:$0xff]
    %v1778 = vld [vmem:[#allocation9 + $0x188] sm:$0xff]
    %v1779 = vld [vmem:[#allocation9 + $0x190] sm:$0xff]
    %v1780 = vld [vmem:[#allocation9 + $0x198] sm:$0xff]
    %v1781 = vld [vmem:[#allocation9 + $0x1a0] sm:$0xff]
    %v1782 = vld [vmem:[#allocation9 + $0x1a8] sm:$0xff]
    %v1783 = vld [vmem:[#allocation9 + $0x1b0] sm:$0xff]
    %v1784 = vld [vmem:[#allocation9 + $0x1b8] sm:$0xff]
    %v1785 = vld [vmem:[#allocation9 + $0x1c0] sm:$0xff]
    %v1786 = vld [vmem:[#allocation9 + $0x1c8] sm:$0xff]
    %v1787 = vld [vmem:[#allocation9 + $0x1d0] sm:$0xff]
    %v1788 = vld [vmem:[#allocation9 + $0x1d8] sm:$0xff]
    %v1789 = vld [vmem:[#allocation9 + $0x1e0] sm:$0xff]
    %v1790 = vld [vmem:[#allocation9 + $0x1e8] sm:$0xff]
    %v1791 = vld [vmem:[#allocation9 + $0x1f0] sm:$0xff]
    %v1792 = vld [vmem:[#allocation9 + $0x1f8] sm:$0xff]
    %v1793 = vld [vmem:[#allocation9 + $0x200] sm:$0xff]
    %v1794 = vld [vmem:[#allocation9 + $0x208] sm:$0xff]
    %v1795 = vld [vmem:[#allocation9 + $0x210] sm:$0xff]
    %v1796 = vld [vmem:[#allocation9 + $0x218] sm:$0xff]
    %v1797 = vld [vmem:[#allocation9 + $0x220] sm:$0xff]
    %v1798 = vld [vmem:[#allocation9 + $0x228] sm:$0xff]
    %v1799 = vld [vmem:[#allocation9 + $0x230] sm:$0xff]
    %v1800 = vld [vmem:[#allocation9 + $0x238] sm:$0xff]
    %v1801 = vld [vmem:[#allocation9 + $0x240] sm:$0xff]
    %v1802 = vld [vmem:[#allocation9 + $0x248] sm:$0xff]
    %v1803 = vld [vmem:[#allocation9 + $0x250] sm:$0xff]
    %v1804 = vld [vmem:[#allocation9 + $0x258] sm:$0xff]
    %v1805 = vld [vmem:[#allocation9 + $0x260] sm:$0xff]
    %v1806 = vld [vmem:[#allocation9 + $0x268] sm:$0xff]
    %v1807 = vld [vmem:[#allocation9 + $0x270] sm:$0xff]
    %v1808 = vld [vmem:[#allocation9 + $0x278] sm:$0xff]
    %v1809 = vld [vmem:[#allocation9 + $0x280] sm:$0xff]
    %v1810 = vld [vmem:[#allocation9 + $0x288] sm:$0xff]
    %v1811 = vld [vmem:[#allocation9 + $0x290] sm:$0xff]
    %v1812 = vld [vmem:[#allocation9 + $0x298] sm:$0xff]
    %v1813 = vld [vmem:[#allocation9 + $0x2a0] sm:$0xff]
    %v1814 = vld [vmem:[#allocation9 + $0x2a8] sm:$0xff]
    %v1815 = vld [vmem:[#allocation9 + $0x2b0] sm:$0xff]
    %v1816 = vld [vmem:[#allocation9 + $0x2b8] sm:$0xff]
    %v1817 = vld [vmem:[#allocation9 + $0x2c0] sm:$0xff]
    %v1818 = vld [vmem:[#allocation9 + $0x2c8] sm:$0xff]
    %v1819 = vld [vmem:[#allocation9 + $0x2d0] sm:$0xff]
    %v1820 = vld [vmem:[#allocation9 + $0x2d8] sm:$0xff]
    %v1821 = vld [vmem:[#allocation9 + $0x2e0] sm:$0xff]
    %v1822 = vld [vmem:[#allocation9 + $0x2e8] sm:$0xff]
    %v1823 = vld [vmem:[#allocation9 + $0x2f0] sm:$0xff]
    %v1824 = vld [vmem:[#allocation9 + $0x2f8] sm:$0xff]
    %v1825 = vld [vmem:[#allocation9 + $0x300] sm:$0xff]
    %v1826 = vld [vmem:[#allocation9 + $0x308] sm:$0xff]
    %v1827 = vld [vmem:[#allocation9 + $0x310] sm:$0xff]
    %v1828 = vld [vmem:[#allocation9 + $0x318] sm:$0xff]
    %v1829 = vld [vmem:[#allocation9 + $0x320] sm:$0xff]
    %v1830 = vld [vmem:[#allocation9 + $0x328] sm:$0xff]
    %v1831 = vld [vmem:[#allocation9 + $0x330] sm:$0xff]
    %v1832 = vld [vmem:[#allocation9 + $0x338] sm:$0xff]
    %v1833 = vld [vmem:[#allocation9 + $0x340] sm:$0xff]
    %v1834 = vld [vmem:[#allocation9 + $0x348] sm:$0xff]
    %v1835 = vld [vmem:[#allocation9 + $0x350] sm:$0xff]
    %v1836 = vld [vmem:[#allocation9 + $0x358] sm:$0xff]
    %v1837 = vld [vmem:[#allocation9 + $0x360] sm:$0xff]
    %v1838 = vld [vmem:[#allocation9 + $0x368] sm:$0xff]
    %v1839 = vld [vmem:[#allocation9 + $0x370] sm:$0xff]
    %v1840 = vld [vmem:[#allocation9 + $0x378] sm:$0xff]
    %v1841 = vld [vmem:[#allocation9 + $0x380] sm:$0xff]
    %v1842 = vld [vmem:[#allocation9 + $0x388] sm:$0xff]
    %v1843 = vld [vmem:[#allocation9 + $0x390] sm:$0xff]
    %v1844 = vld [vmem:[#allocation9 + $0x398] sm:$0xff]
    %v1845 = vld [vmem:[#allocation9 + $0x3a0] sm:$0xff]
    %v1846 = vld [vmem:[#allocation9 + $0x3a8] sm:$0xff]
    %v1847 = vld [vmem:[#allocation9 + $0x3b0] sm:$0xff]
    %v1848 = vld [vmem:[#allocation9 + $0x3b8] sm:$0xff]
    %v1849 = vld [vmem:[#allocation9 + $0x3c0] sm:$0xff]
    %v1850 = vld [vmem:[#allocation9 + $0x3c8] sm:$0xff]
    %v1851 = vld [vmem:[#allocation9 + $0x3d0] sm:$0xff]
    %v1852 = vld [vmem:[#allocation9 + $0x3d8] sm:$0xff]
    %v1853 = vld [vmem:[#allocation9 + $0x3e0] sm:$0xff]
    %v1854 = vld [vmem:[#allocation9 + $0x3e8] sm:$0xff]
    %v1855 = vld [vmem:[#allocation9 + $0x3f0] sm:$0xff]
    %v1856 = vld [vmem:[#allocation9 + $0x3f8] sm:$0xff]
    %v1857 = vld [vmem:[%s7] sm:$0xf]
    %v1859 = vperm.slane %v1857, 0
    %v1860 = vperm.slane %v1857, 1
    %v1861 = vperm.slane %v1857, 2
    %v1862 = vperm.slane %v1857, 3
    %v1995 = vunpack.c.l.b16 %v1729
    %v1996 = vunpack.c.h.b16 %v1729
    %v1997 = vunpack.c.l.b16 %v1730
    %v1998 = vunpack.c.h.b16 %v1730
    %v1999 = vunpack.c.l.b16 %v1731
    %v2000 = vunpack.c.h.b16 %v1731
    %v2001 = vunpack.c.l.b16 %v1732
    %v2002 = vunpack.c.h.b16 %v1732
    %v2003 = vunpack.c.l.b16 %v1733
    %v2004 = vunpack.c.h.b16 %v1733
    %v2005 = vunpack.c.l.b16 %v1734
    %v2006 = vunpack.c.h.b16 %v1734
    %v2007 = vunpack.c.l.b16 %v1735
    %v2008 = vunpack.c.h.b16 %v1735
    %v2009 = vunpack.c.l.b16 %v1736
    %v2010 = vunpack.c.h.b16 %v1736
    %v2011 = vunpack.c.l.b16 %v1737
    %v2012 = vunpack.c.h.b16 %v1737
    %v2013 = vunpack.c.l.b16 %v1738
    %v2014 = vunpack.c.h.b16 %v1738
    %v2015 = vunpack.c.l.b16 %v1739
    %v2016 = vunpack.c.h.b16 %v1739
    %v2017 = vunpack.c.l.b16 %v1740
    %v2018 = vunpack.c.h.b16 %v1740
    %v2019 = vunpack.c.l.b16 %v1741
    %v2020 = vunpack.c.h.b16 %v1741
    %v2021 = vunpack.c.l.b16 %v1742
    %v2022 = vunpack.c.h.b16 %v1742
    %v2023 = vunpack.c.l.b16 %v1743
    %v2024 = vunpack.c.h.b16 %v1743
    %v2025 = vunpack.c.l.b16 %v1744
    %v2026 = vunpack.c.h.b16 %v1744
    %v2027 = vunpack.c.l.b16 %v1745
    %v2028 = vunpack.c.h.b16 %v1745
    %v2029 = vunpack.c.l.b16 %v1746
    %v2030 = vunpack.c.h.b16 %v1746
    %v2031 = vunpack.c.l.b16 %v1747
    %v2032 = vunpack.c.h.b16 %v1747
    %v2033 = vunpack.c.l.b16 %v1748
    %v2034 = vunpack.c.h.b16 %v1748
    %v2035 = vunpack.c.l.b16 %v1749
    %v2036 = vunpack.c.h.b16 %v1749
    %v2037 = vunpack.c.l.b16 %v1750
    %v2038 = vunpack.c.h.b16 %v1750
    %v2039 = vunpack.c.l.b16 %v1751
    %v2040 = vunpack.c.h.b16 %v1751
    %v2041 = vunpack.c.l.b16 %v1752
    %v2042 = vunpack.c.h.b16 %v1752
    %v2043 = vunpack.c.l.b16 %v1753
    %v2044 = vunpack.c.h.b16 %v1753
    %v2045 = vunpack.c.l.b16 %v1754
    %v2046 = vunpack.c.h.b16 %v1754
    %v2047 = vunpack.c.l.b16 %v1755
    %v2048 = vunpack.c.h.b16 %v1755
    %v2049 = vunpack.c.l.b16 %v1756
    %v2050 = vunpack.c.h.b16 %v1756
    %v2051 = vunpack.c.l.b16 %v1757
    %v2052 = vunpack.c.h.b16 %v1757
    %v2053 = vunpack.c.l.b16 %v1758
    %v2054 = vunpack.c.h.b16 %v1758
    %v2055 = vunpack.c.l.b16 %v1759
    %v2056 = vunpack.c.h.b16 %v1759
    %v2057 = vunpack.c.l.b16 %v1760
    %v2058 = vunpack.c.h.b16 %v1760
    %v2059 = vunpack.c.l.b16 %v1761
    %v2060 = vunpack.c.h.b16 %v1761
    %v2061 = vunpack.c.l.b16 %v1762
    %v2062 = vunpack.c.h.b16 %v1762
    %v2063 = vunpack.c.l.b16 %v1763
    %v2064 = vunpack.c.h.b16 %v1763
    %v2065 = vunpack.c.l.b16 %v1764
    %v2066 = vunpack.c.h.b16 %v1764
    %v2067 = vunpack.c.l.b16 %v1765
    %v2068 = vunpack.c.h.b16 %v1765
    %v2069 = vunpack.c.l.b16 %v1766
    %v2070 = vunpack.c.h.b16 %v1766
    %v2071 = vunpack.c.l.b16 %v1767
    %v2072 = vunpack.c.h.b16 %v1767
    %v2073 = vunpack.c.l.b16 %v1768
    %v2074 = vunpack.c.h.b16 %v1768
    %v2075 = vunpack.c.l.b16 %v1769
    %v2076 = vunpack.c.h.b16 %v1769
    %v2077 = vunpack.c.l.b16 %v1770
    %v2078 = vunpack.c.h.b16 %v1770
    %v2079 = vunpack.c.l.b16 %v1771
    %v2080 = vunpack.c.h.b16 %v1771
    %v2081 = vunpack.c.l.b16 %v1772
    %v2082 = vunpack.c.h.b16 %v1772
    %v2083 = vunpack.c.l.b16 %v1773
    %v2084 = vunpack.c.h.b16 %v1773
    %v2085 = vunpack.c.l.b16 %v1774
    %v2086 = vunpack.c.h.b16 %v1774
    %v2087 = vunpack.c.l.b16 %v1775
    %v2088 = vunpack.c.h.b16 %v1775
    %v2089 = vunpack.c.l.b16 %v1776
    %v2090 = vunpack.c.h.b16 %v1776
    %v2091 = vunpack.c.l.b16 %v1777
    %v2092 = vunpack.c.h.b16 %v1777
    %v2093 = vunpack.c.l.b16 %v1778
    %v2094 = vunpack.c.h.b16 %v1778
    %v2095 = vunpack.c.l.b16 %v1779
    %v2096 = vunpack.c.h.b16 %v1779
    %v2097 = vunpack.c.l.b16 %v1780
    %v2098 = vunpack.c.h.b16 %v1780
    %v2099 = vunpack.c.l.b16 %v1781
    %v2100 = vunpack.c.h.b16 %v1781
    %v2101 = vunpack.c.l.b16 %v1782
    %v2102 = vunpack.c.h.b16 %v1782
    %v2103 = vunpack.c.l.b16 %v1783
    %v2104 = vunpack.c.h.b16 %v1783
    %v2105 = vunpack.c.l.b16 %v1784
    %v2106 = vunpack.c.h.b16 %v1784
    %v2107 = vunpack.c.l.b16 %v1785
    %v2108 = vunpack.c.h.b16 %v1785
    %v2109 = vunpack.c.l.b16 %v1786
    %v2110 = vunpack.c.h.b16 %v1786
    %v2111 = vunpack.c.l.b16 %v1787
    %v2112 = vunpack.c.h.b16 %v1787
    %v2113 = vunpack.c.l.b16 %v1788
    %v2114 = vunpack.c.h.b16 %v1788
    %v2115 = vunpack.c.l.b16 %v1789
    %v2116 = vunpack.c.h.b16 %v1789
    %v2117 = vunpack.c.l.b16 %v1790
    %v2118 = vunpack.c.h.b16 %v1790
    %v2119 = vunpack.c.l.b16 %v1791
    %v2120 = vunpack.c.h.b16 %v1791
    %v2121 = vunpack.c.l.b16 %v1792
    %v2122 = vunpack.c.h.b16 %v1792
    %v2123 = vunpack.c.l.b16 %v1793
    %v2124 = vunpack.c.h.b16 %v1793
    %v2125 = vunpack.c.l.b16 %v1794
    %v2126 = vunpack.c.h.b16 %v1794
    %v2127 = vunpack.c.l.b16 %v1795
    %v2128 = vunpack.c.h.b16 %v1795
    %v2129 = vunpack.c.l.b16 %v1796
    %v2130 = vunpack.c.h.b16 %v1796
    %v2131 = vunpack.c.l.b16 %v1797
    %v2132 = vunpack.c.h.b16 %v1797
    %v2133 = vunpack.c.l.b16 %v1798
    %v2134 = vunpack.c.h.b16 %v1798
    %v2135 = vunpack.c.l.b16 %v1799
    %v2136 = vunpack.c.h.b16 %v1799
    %v2137 = vunpack.c.l.b16 %v1800
    %v2138 = vunpack.c.h.b16 %v1800
    %v2139 = vunpack.c.l.b16 %v1801
    %v2140 = vunpack.c.h.b16 %v1801
    %v2141 = vunpack.c.l.b16 %v1802
    %v2142 = vunpack.c.h.b16 %v1802
    %v2143 = vunpack.c.l.b16 %v1803
    %v2144 = vunpack.c.h.b16 %v1803
    %v2145 = vunpack.c.l.b16 %v1804
    %v2146 = vunpack.c.h.b16 %v1804
    %v2147 = vunpack.c.l.b16 %v1805
    %v2148 = vunpack.c.h.b16 %v1805
    %v2149 = vunpack.c.l.b16 %v1806
    %v2150 = vunpack.c.h.b16 %v1806
    %v2151 = vunpack.c.l.b16 %v1807
    %v2152 = vunpack.c.h.b16 %v1807
    %v2153 = vunpack.c.l.b16 %v1808
    %v2154 = vunpack.c.h.b16 %v1808
    %v2155 = vunpack.c.l.b16 %v1809
    %v2156 = vunpack.c.h.b16 %v1809
    %v2157 = vunpack.c.l.b16 %v1810
    %v2158 = vunpack.c.h.b16 %v1810
    %v2159 = vunpack.c.l.b16 %v1811
    %v2160 = vunpack.c.h.b16 %v1811
    %v2161 = vunpack.c.l.b16 %v1812
    %v2162 = vunpack.c.h.b16 %v1812
    %v2163 = vunpack.c.l.b16 %v1813
    %v2164 = vunpack.c.h.b16 %v1813
    %v2165 = vunpack.c.l.b16 %v1814
    %v2166 = vunpack.c.h.b16 %v1814
    %v2167 = vunpack.c.l.b16 %v1815
    %v2168 = vunpack.c.h.b16 %v1815
    %v2169 = vunpack.c.l.b16 %v1816
    %v2170 = vunpack.c.h.b16 %v1816
    %v2171 = vunpack.c.l.b16 %v1817
    %v2172 = vunpack.c.h.b16 %v1817
    %v2173 = vunpack.c.l.b16 %v1818
    %v2174 = vunpack.c.h.b16 %v1818
    %v2175 = vunpack.c.l.b16 %v1819
    %v2176 = vunpack.c.h.b16 %v1819
    %v2177 = vunpack.c.l.b16 %v1820
    %v2178 = vunpack.c.h.b16 %v1820
    %v2179 = vunpack.c.l.b16 %v1821
    %v2180 = vunpack.c.h.b16 %v1821
    %v2181 = vunpack.c.l.b16 %v1822
    %v2182 = vunpack.c.h.b16 %v1822
    %v2183 = vunpack.c.l.b16 %v1823
    %v2184 = vunpack.c.h.b16 %v1823
    %v2185 = vunpack.c.l.b16 %v1824
    %v2186 = vunpack.c.h.b16 %v1824
    %v2187 = vunpack.c.l.b16 %v1825
    %v2188 = vunpack.c.h.b16 %v1825
    %v2189 = vunpack.c.l.b16 %v1826
    %v2190 = vunpack.c.h.b16 %v1826
    %v2191 = vunpack.c.l.b16 %v1827
    %v2192 = vunpack.c.h.b16 %v1827
    %v2193 = vunpack.c.l.b16 %v1828
    %v2194 = vunpack.c.h.b16 %v1828
    %v2195 = vunpack.c.l.b16 %v1829
    %v2196 = vunpack.c.h.b16 %v1829
    %v2197 = vunpack.c.l.b16 %v1830
    %v2198 = vunpack.c.h.b16 %v1830
    %v2199 = vunpack.c.l.b16 %v1831
    %v2200 = vunpack.c.h.b16 %v1831
    %v2201 = vunpack.c.l.b16 %v1832
    %v2202 = vunpack.c.h.b16 %v1832
    %v2203 = vunpack.c.l.b16 %v1833
    %v2204 = vunpack.c.h.b16 %v1833
    %v2205 = vunpack.c.l.b16 %v1834
    %v2206 = vunpack.c.h.b16 %v1834
    %v2207 = vunpack.c.l.b16 %v1835
    %v2208 = vunpack.c.h.b16 %v1835
    %v2209 = vunpack.c.l.b16 %v1836
    %v2210 = vunpack.c.h.b16 %v1836
    %v2211 = vunpack.c.l.b16 %v1837
    %v2212 = vunpack.c.h.b16 %v1837
    %v2213 = vunpack.c.l.b16 %v1838
    %v2214 = vunpack.c.h.b16 %v1838
    %v2215 = vunpack.c.l.b16 %v1839
    %v2216 = vunpack.c.h.b16 %v1839
    %v2217 = vunpack.c.l.b16 %v1840
    %v2218 = vunpack.c.h.b16 %v1840
    %v2219 = vunpack.c.l.b16 %v1841
    %v2220 = vunpack.c.h.b16 %v1841
    %v2221 = vunpack.c.l.b16 %v1842
    %v2222 = vunpack.c.h.b16 %v1842
    %v2223 = vunpack.c.l.b16 %v1843
    %v2224 = vunpack.c.h.b16 %v1843
    %v2225 = vunpack.c.l.b16 %v1844
    %v2226 = vunpack.c.h.b16 %v1844
    %v2227 = vunpack.c.l.b16 %v1845
    %v2228 = vunpack.c.h.b16 %v1845
    %v2229 = vunpack.c.l.b16 %v1846
    %v2230 = vunpack.c.h.b16 %v1846
    %v2231 = vunpack.c.l.b16 %v1847
    %v2232 = vunpack.c.h.b16 %v1847
    %v2233 = vunpack.c.l.b16 %v1848
    %v2234 = vunpack.c.h.b16 %v1848
    %v2235 = vunpack.c.l.b16 %v1849
    %v2236 = vunpack.c.h.b16 %v1849
    %v2237 = vunpack.c.l.b16 %v1850
    %v2238 = vunpack.c.h.b16 %v1850
    %v2239 = vunpack.c.l.b16 %v1851
    %v2240 = vunpack.c.h.b16 %v1851
    %v2241 = vunpack.c.l.b16 %v1852
    %v2242 = vunpack.c.h.b16 %v1852
    %v2243 = vunpack.c.l.b16 %v1853
    %v2244 = vunpack.c.h.b16 %v1853
    %v2245 = vunpack.c.l.b16 %v1854
    %v2246 = vunpack.c.h.b16 %v1854
    %v2247 = vunpack.c.l.b16 %v1855
    %v2248 = vunpack.c.h.b16 %v1855
    %v2249 = vunpack.c.l.b16 %v1856
    %v2250 = vunpack.c.h.b16 %v1856
    %v2251 = vpack.c.b16 %v1999, %v1995
    %v2252 = vpack.c.b16 %v2000, %v1996
    %v2253 = vpack.c.b16 %v2001, %v1997
    %v2254 = vpack.c.b16 %v2002, %v1998
    %v2255 = vpack.c.b16 %v2007, %v2003
    %v2256 = vpack.c.b16 %v2008, %v2004
    %v2257 = vpack.c.b16 %v2009, %v2005
    %v2258 = vpack.c.b16 %v2010, %v2006
    %v2259 = vpack.c.b16 %v2015, %v2011
    %v2260 = vpack.c.b16 %v2016, %v2012
    %v2261 = vpack.c.b16 %v2017, %v2013
    %v2262 = vpack.c.b16 %v2018, %v2014
    %v2263 = vpack.c.b16 %v2023, %v2019
    %v2264 = vpack.c.b16 %v2024, %v2020
    %v2265 = vpack.c.b16 %v2025, %v2021
    %v2266 = vpack.c.b16 %v2026, %v2022
    %v2267 = vpack.c.b16 %v2031, %v2027
    %v2268 = vpack.c.b16 %v2032, %v2028
    %v2269 = vpack.c.b16 %v2033, %v2029
    %v2270 = vpack.c.b16 %v2034, %v2030
    %v2271 = vpack.c.b16 %v2039, %v2035
    %v2272 = vpack.c.b16 %v2040, %v2036
    %v2273 = vpack.c.b16 %v2041, %v2037
    %v2274 = vpack.c.b16 %v2042, %v2038
    %v2275 = vpack.c.b16 %v2047, %v2043
    %v2276 = vpack.c.b16 %v2048, %v2044
    %v2277 = vpack.c.b16 %v2049, %v2045
    %v2278 = vpack.c.b16 %v2050, %v2046
    %v2279 = vpack.c.b16 %v2055, %v2051
    %v2280 = vpack.c.b16 %v2056, %v2052
    %v2281 = vpack.c.b16 %v2057, %v2053
    %v2282 = vpack.c.b16 %v2058, %v2054
    %v2283 = vpack.c.b16 %v2063, %v2059
    %v2284 = vpack.c.b16 %v2064, %v2060
    %v2285 = vpack.c.b16 %v2065, %v2061
    %v2286 = vpack.c.b16 %v2066, %v2062
    %v2287 = vpack.c.b16 %v2071, %v2067
    %v2288 = vpack.c.b16 %v2072, %v2068
    %v2289 = vpack.c.b16 %v2073, %v2069
    %v2290 = vpack.c.b16 %v2074, %v2070
    %v2291 = vpack.c.b16 %v2079, %v2075
    %v2292 = vpack.c.b16 %v2080, %v2076
    %v2293 = vpack.c.b16 %v2081, %v2077
    %v2294 = vpack.c.b16 %v2082, %v2078
    %v2295 = vpack.c.b16 %v2087, %v2083
    %v2296 = vpack.c.b16 %v2088, %v2084
    %v2297 = vpack.c.b16 %v2089, %v2085
    %v2298 = vpack.c.b16 %v2090, %v2086
    %v2299 = vpack.c.b16 %v2095, %v2091
    %v2300 = vpack.c.b16 %v2096, %v2092
    %v2301 = vpack.c.b16 %v2097, %v2093
    %v2302 = vpack.c.b16 %v2098, %v2094
    %v2303 = vpack.c.b16 %v2103, %v2099
    %v2304 = vpack.c.b16 %v2104, %v2100
    %v2305 = vpack.c.b16 %v2105, %v2101
    %v2306 = vpack.c.b16 %v2106, %v2102
    %v2307 = vpack.c.b16 %v2111, %v2107
    %v2308 = vpack.c.b16 %v2112, %v2108
    %v2309 = vpack.c.b16 %v2113, %v2109
    %v2310 = vpack.c.b16 %v2114, %v2110
    %v2311 = vpack.c.b16 %v2119, %v2115
    %v2312 = vpack.c.b16 %v2120, %v2116
    %v2313 = vpack.c.b16 %v2121, %v2117
    %v2314 = vpack.c.b16 %v2122, %v2118
    %v2315 = vpack.c.b16 %v2127, %v2123
    %v2316 = vpack.c.b16 %v2128, %v2124
    %v2317 = vpack.c.b16 %v2129, %v2125
    %v2318 = vpack.c.b16 %v2130, %v2126
    %v2319 = vpack.c.b16 %v2135, %v2131
    %v2320 = vpack.c.b16 %v2136, %v2132
    %v2321 = vpack.c.b16 %v2137, %v2133
    %v2322 = vpack.c.b16 %v2138, %v2134
    %v2323 = vpack.c.b16 %v2143, %v2139
    %v2324 = vpack.c.b16 %v2144, %v2140
    %v2325 = vpack.c.b16 %v2145, %v2141
    %v2326 = vpack.c.b16 %v2146, %v2142
    %v2327 = vpack.c.b16 %v2151, %v2147
    %v2328 = vpack.c.b16 %v2152, %v2148
    %v2329 = vpack.c.b16 %v2153, %v2149
    %v2330 = vpack.c.b16 %v2154, %v2150
    %v2331 = vpack.c.b16 %v2159, %v2155
    %v2332 = vpack.c.b16 %v2160, %v2156
    %v2333 = vpack.c.b16 %v2161, %v2157
    %v2334 = vpack.c.b16 %v2162, %v2158
    %v2335 = vpack.c.b16 %v2167, %v2163
    %v2336 = vpack.c.b16 %v2168, %v2164
    %v2337 = vpack.c.b16 %v2169, %v2165
    %v2338 = vpack.c.b16 %v2170, %v2166
    %v2339 = vpack.c.b16 %v2175, %v2171
    %v2340 = vpack.c.b16 %v2176, %v2172
    %v2341 = vpack.c.b16 %v2177, %v2173
    %v2342 = vpack.c.b16 %v2178, %v2174
    %v2343 = vpack.c.b16 %v2183, %v2179
    %v2344 = vpack.c.b16 %v2184, %v2180
    %v2345 = vpack.c.b16 %v2185, %v2181
    %v2346 = vpack.c.b16 %v2186, %v2182
    %v2347 = vpack.c.b16 %v2191, %v2187
    %v2348 = vpack.c.b16 %v2192, %v2188
    %v2349 = vpack.c.b16 %v2193, %v2189
    %v2350 = vpack.c.b16 %v2194, %v2190
    %v2351 = vpack.c.b16 %v2199, %v2195
    %v2352 = vpack.c.b16 %v2200, %v2196
    %v2353 = vpack.c.b16 %v2201, %v2197
    %v2354 = vpack.c.b16 %v2202, %v2198
    %v2355 = vpack.c.b16 %v2207, %v2203
    %v2356 = vpack.c.b16 %v2208, %v2204
    %v2357 = vpack.c.b16 %v2209, %v2205
    %v2358 = vpack.c.b16 %v2210, %v2206
    %v2359 = vpack.c.b16 %v2215, %v2211
    %v2360 = vpack.c.b16 %v2216, %v2212
    %v2361 = vpack.c.b16 %v2217, %v2213
    %v2362 = vpack.c.b16 %v2218, %v2214
    %v2363 = vpack.c.b16 %v2223, %v2219
    %v2364 = vpack.c.b16 %v2224, %v2220
    %v2365 = vpack.c.b16 %v2225, %v2221
    %v2366 = vpack.c.b16 %v2226, %v2222
    %v2367 = vpack.c.b16 %v2231, %v2227
    %v2368 = vpack.c.b16 %v2232, %v2228
    %v2369 = vpack.c.b16 %v2233, %v2229
    %v2370 = vpack.c.b16 %v2234, %v2230
    %v2371 = vpack.c.b16 %v2239, %v2235
    %v2372 = vpack.c.b16 %v2240, %v2236
    %v2373 = vpack.c.b16 %v2241, %v2237
    %v2374 = vpack.c.b16 %v2242, %v2238
    %v2375 = vpack.c.b16 %v2247, %v2243
    %v2376 = vpack.c.b16 %v2248, %v2244
    %v2377 = vpack.c.b16 %v2249, %v2245
    %v2378 = vpack.c.b16 %v2250, %v2246
    %2507 = vmatpush.bf16.msra.mxu0 %v2279
    %2508 = vmatpush.bf16.msra.mxu0 %v2275
    %2509 = vmatpush.bf16.msra.mxu0 %v2271
    %2510 = vmatpush.bf16.msra.mxu0 %v2267
    %2511 = vmatpush.bf16.msra.mxu0 %v2263
    %2512 = vmatpush.bf16.msra.mxu0 %v2259
    %2513 = vmatpush.bf16.msra.mxu0 %v2255
    %2514 = vmatpush.bf16.msra.mxu0 %v2251
    %2515 = vmatmul.bf16.gmra.mxu0 %v1725
    %v2516 = vpop.f32.mrf.mxu0
    %v2517 = vadd.f32 %v1859, %v2516
    %v2518 = vpop.f32.mrf.mxu0
    %2519 = vdwg.mxu0
    %2520 = vmatpush.bf16.msra.mxu0 %v2311
    %2521 = vmatpush.bf16.msra.mxu0 %v2307
    %2522 = vmatpush.bf16.msra.mxu0 %v2303
    %2523 = vmatpush.bf16.msra.mxu0 %v2299
    %2524 = vmatpush.bf16.msra.mxu0 %v2295
    %2525 = vmatpush.bf16.msra.mxu0 %v2291
    %2526 = vmatpush.bf16.msra.mxu0 %v2287
    %2527 = vmatpush.bf16.msra.mxu0 %v2283
    %2528 = vmatmul.bf16.gmra.mxu0 %v1726
    %v2529 = vpop.f32.mrf.mxu0
    %v2530 = vadd.f32 %v2517, %v2529
    %v2531 = vpop.f32.mrf.mxu0
    %2532 = vdwg.mxu0
    %2533 = vmatpush.bf16.msra.mxu0 %v2343
    %2534 = vmatpush.bf16.msra.mxu0 %v2339
    %2535 = vmatpush.bf16.msra.mxu0 %v2335
    %2536 = vmatpush.bf16.msra.mxu0 %v2331
    %2537 = vmatpush.bf16.msra.mxu0 %v2327
    %2538 = vmatpush.bf16.msra.mxu0 %v2323
    %2539 = vmatpush.bf16.msra.mxu0 %v2319
    %2540 = vmatpush.bf16.msra.mxu0 %v2315
    %2541 = vmatmul.bf16.gmra.mxu0 %v1727
    %v2542 = vpop.f32.mrf.mxu0
    %v2543 = vadd.f32 %v2530, %v2542
    %v2544 = vpop.f32.mrf.mxu0
    %2545 = vdwg.mxu0
    %2546 = vmatpush.bf16.msra.mxu0 %v2375
    %2547 = vmatpush.bf16.msra.mxu0 %v2371
    %2548 = vmatpush.bf16.msra.mxu0 %v2367
    %2549 = vmatpush.bf16.msra.mxu0 %v2363
    %2550 = vmatpush.bf16.msra.mxu0 %v2359
    %2551 = vmatpush.bf16.msra.mxu0 %v2355
    %2552 = vmatpush.bf16.msra.mxu0 %v2351
    %2553 = vmatpush.bf16.msra.mxu0 %v2347
    %2554 = vmatmul.bf16.gmra.mxu0 %v1728
    %v2555 = vpop.f32.mrf.mxu0
    %v2556 = vadd.f32 %v2543, %v2555
    %v2557 = vpop.f32.mrf.mxu0
    %2558 = vdwg.mxu0
    %2559 = vmatpush.bf16.msra.mxu0 %v2280
    %2560 = vmatpush.bf16.msra.mxu0 %v2276
    %2561 = vmatpush.bf16.msra.mxu0 %v2272
    %2562 = vmatpush.bf16.msra.mxu0 %v2268
    %2563 = vmatpush.bf16.msra.mxu0 %v2264
    %2564 = vmatpush.bf16.msra.mxu0 %v2260
    %2565 = vmatpush.bf16.msra.mxu0 %v2256
    %2566 = vmatpush.bf16.msra.mxu0 %v2252
    %2567 = vmatmul.bf16.gmra.mxu0 %v1725
    %v2568 = vpop.f32.mrf.mxu0
    %v2569 = vadd.f32 %v1860, %v2568
    %v2570 = vpop.f32.mrf.mxu0
    %2571 = vdwg.mxu0
    %2572 = vmatpush.bf16.msra.mxu0 %v2312
    %2573 = vmatpush.bf16.msra.mxu0 %v2308
    %2574 = vmatpush.bf16.msra.mxu0 %v2304
    %2575 = vmatpush.bf16.msra.mxu0 %v2300
    %2576 = vmatpush.bf16.msra.mxu0 %v2296
    %2577 = vmatpush.bf16.msra.mxu0 %v2292
    %2578 = vmatpush.bf16.msra.mxu0 %v2288
    %2579 = vmatpush.bf16.msra.mxu0 %v2284
    %2580 = vmatmul.bf16.gmra.mxu0 %v1726
    %v2581 = vpop.f32.mrf.mxu0
    %v2582 = vadd.f32 %v2569, %v2581
    %v2583 = vpop.f32.mrf.mxu0
    %2584 = vdwg.mxu0
    %2585 = vmatpush.bf16.msra.mxu0 %v2344
    %2586 = vmatpush.bf16.msra.mxu0 %v2340
    %2587 = vmatpush.bf16.msra.mxu0 %v2336
    %2588 = vmatpush.bf16.msra.mxu0 %v2332
    %2589 = vmatpush.bf16.msra.mxu0 %v2328
    %2590 = vmatpush.bf16.msra.mxu0 %v2324
    %2591 = vmatpush.bf16.msra.mxu0 %v2320
    %2592 = vmatpush.bf16.msra.mxu0 %v2316
    %2593 = vmatmul.bf16.gmra.mxu0 %v1727
    %v2594 = vpop.f32.mrf.mxu0
    %v2595 = vadd.f32 %v2582, %v2594
    %v2596 = vpop.f32.mrf.mxu0
    %2597 = vdwg.mxu0
    %2598 = vmatpush.bf16.msra.mxu0 %v2376
    %2599 = vmatpush.bf16.msra.mxu0 %v2372
    %2600 = vmatpush.bf16.msra.mxu0 %v2368
    %2601 = vmatpush.bf16.msra.mxu0 %v2364
    %2602 = vmatpush.bf16.msra.mxu0 %v2360
    %2603 = vmatpush.bf16.msra.mxu0 %v2356
    %2604 = vmatpush.bf16.msra.mxu0 %v2352
    %2605 = vmatpush.bf16.msra.mxu0 %v2348
    %2606 = vmatmul.bf16.gmra.mxu0 %v1728
    %v2607 = vpop.f32.mrf.mxu0
    %v2608 = vadd.f32 %v2595, %v2607
    %v2609 = vpop.f32.mrf.mxu0
    %2610 = vdwg.mxu0
    %2611 = vmatpush.bf16.msra.mxu0 %v2281
    %2612 = vmatpush.bf16.msra.mxu0 %v2277
    %2613 = vmatpush.bf16.msra.mxu0 %v2273
    %2614 = vmatpush.bf16.msra.mxu0 %v2269
    %2615 = vmatpush.bf16.msra.mxu0 %v2265
    %2616 = vmatpush.bf16.msra.mxu0 %v2261
    %2617 = vmatpush.bf16.msra.mxu0 %v2257
    %2618 = vmatpush.bf16.msra.mxu0 %v2253
    %2619 = vmatmul.bf16.gmra.mxu0 %v1725
    %v2620 = vpop.f32.mrf.mxu0
    %v2621 = vadd.f32 %v1861, %v2620
    %v2622 = vpop.f32.mrf.mxu0
    %2623 = vdwg.mxu0
    %2624 = vmatpush.bf16.msra.mxu0 %v2313
    %2625 = vmatpush.bf16.msra.mxu0 %v2309
    %2626 = vmatpush.bf16.msra.mxu0 %v2305
    %2627 = vmatpush.bf16.msra.mxu0 %v2301
    %2628 = vmatpush.bf16.msra.mxu0 %v2297
    %2629 = vmatpush.bf16.msra.mxu0 %v2293
    %2630 = vmatpush.bf16.msra.mxu0 %v2289
    %2631 = vmatpush.bf16.msra.mxu0 %v2285
    %2632 = vmatmul.bf16.gmra.mxu0 %v1726
    %v2633 = vpop.f32.mrf.mxu0
    %v2634 = vadd.f32 %v2621, %v2633
    %v2635 = vpop.f32.mrf.mxu0
    %2636 = vdwg.mxu0
    %2637 = vmatpush.bf16.msra.mxu0 %v2345
    %2638 = vmatpush.bf16.msra.mxu0 %v2341
    %2639 = vmatpush.bf16.msra.mxu0 %v2337
    %2640 = vmatpush.bf16.msra.mxu0 %v2333
    %2641 = vmatpush.bf16.msra.mxu0 %v2329
    %2642 = vmatpush.bf16.msra.mxu0 %v2325
    %2643 = vmatpush.bf16.msra.mxu0 %v2321
    %2644 = vmatpush.bf16.msra.mxu0 %v2317
    %2645 = vmatmul.bf16.gmra.mxu0 %v1727
    %v2646 = vpop.f32.mrf.mxu0
    %v2647 = vadd.f32 %v2634, %v2646
    %v2648 = vpop.f32.mrf.mxu0
    %2649 = vdwg.mxu0
    %2650 = vmatpush.bf16.msra.mxu0 %v2377
    %2651 = vmatpush.bf16.msra.mxu0 %v2373
    %2652 = vmatpush.bf16.msra.mxu0 %v2369
    %2653 = vmatpush.bf16.msra.mxu0 %v2365
    %2654 = vmatpush.bf16.msra.mxu0 %v2361
    %2655 = vmatpush.bf16.msra.mxu0 %v2357
    %2656 = vmatpush.bf16.msra.mxu0 %v2353
    %2657 = vmatpush.bf16.msra.mxu0 %v2349
    %2658 = vmatmul.bf16.gmra.mxu0 %v1728
    %v2659 = vpop.f32.mrf.mxu0
    %v2660 = vadd.f32 %v2647, %v2659
    %v2661 = vpop.f32.mrf.mxu0
    %2662 = vdwg.mxu0
    %2663 = vmatpush.bf16.msra.mxu0 %v2282
    %2664 = vmatpush.bf16.msra.mxu0 %v2278
    %2665 = vmatpush.bf16.msra.mxu0 %v2274
    %2666 = vmatpush.bf16.msra.mxu0 %v2270
    %2667 = vmatpush.bf16.msra.mxu0 %v2266
    %2668 = vmatpush.bf16.msra.mxu0 %v2262
    %2669 = vmatpush.bf16.msra.mxu0 %v2258
    %2670 = vmatpush.bf16.msra.mxu0 %v2254
    %2671 = vmatmul.bf16.gmra.mxu0 %v1725
    %v2672 = vpop.f32.mrf.mxu0
    %v2673 = vadd.f32 %v1862, %v2672
    %v2674 = vpop.f32.mrf.mxu0
    %2675 = vdwg.mxu0
    %2676 = vmatpush.bf16.msra.mxu0 %v2314
    %2677 = vmatpush.bf16.msra.mxu0 %v2310
    %2678 = vmatpush.bf16.msra.mxu0 %v2306
    %2679 = vmatpush.bf16.msra.mxu0 %v2302
    %2680 = vmatpush.bf16.msra.mxu0 %v2298
    %2681 = vmatpush.bf16.msra.mxu0 %v2294
    %2682 = vmatpush.bf16.msra.mxu0 %v2290
    %2683 = vmatpush.bf16.msra.mxu0 %v2286
    %2684 = vmatmul.bf16.gmra.mxu0 %v1726
    %v2685 = vpop.f32.mrf.mxu0
    %v2686 = vadd.f32 %v2673, %v2685
    %v2687 = vpop.f32.mrf.mxu0
    %2688 = vdwg.mxu0
    %2689 = vmatpush.bf16.msra.mxu0 %v2346
    %2690 = vmatpush.bf16.msra.mxu0 %v2342
    %2691 = vmatpush.bf16.msra.mxu0 %v2338
    %2692 = vmatpush.bf16.msra.mxu0 %v2334
    %2693 = vmatpush.bf16.msra.mxu0 %v2330
    %2694 = vmatpush.bf16.msra.mxu0 %v2326
    %2695 = vmatpush.bf16.msra.mxu0 %v2322
    %2696 = vmatpush.bf16.msra.mxu0 %v2318
    %2697 = vmatmul.bf16.gmra.mxu0 %v1727
    %v2698 = vpop.f32.mrf.mxu0
    %v2699 = vadd.f32 %v2686, %v2698
    %v2700 = vpop.f32.mrf.mxu0
    %2701 = vdwg.mxu0
    %2702 = vmatpush.bf16.msra.mxu0 %v2378
    %2703 = vmatpush.bf16.msra.mxu0 %v2374
    %2704 = vmatpush.bf16.msra.mxu0 %v2370
    %2705 = vmatpush.bf16.msra.mxu0 %v2366
    %2706 = vmatpush.bf16.msra.mxu0 %v2362
    %2707 = vmatpush.bf16.msra.mxu0 %v2358
    %2708 = vmatpush.bf16.msra.mxu0 %v2354
    %2709 = vmatpush.bf16.msra.mxu0 %v2350
    %2710 = vmatmul.bf16.gmra.mxu0 %v1728
    %v2711 = vpop.f32.mrf.mxu0
    %v2712 = vadd.f32 %v2699, %v2711
    %v2713 = vpop.f32.mrf.mxu0
    %2714 = vdwg.mxu0
    %vm2715 = vcmp.gt.f32.partialorder %v2556, 0.0
    %vm2716 = vcmp.gt.f32.partialorder %v2608, 0.0
    %vm2717 = vcmp.gt.f32.partialorder %v2660, 0.0
    %vm2718 = vcmp.gt.f32.partialorder %v2712, 0.0
    %v2719 = vmul.f32 %v2556, 0.2
    %v2720 = vmul.f32 %v2608, 0.2
    %v2721 = vmul.f32 %v2660, 0.2
    %v2722 = vmul.f32 %v2712, 0.2
    %v2723 = vsel %vm2715, %v2556, %v2719
    %v2724 = vsel %vm2716, %v2608, %v2720
    %v2725 = vsel %vm2717, %v2660, %v2721
    %v2726 = vsel %vm2718, %v2712, %v2722
    %v2727 = vld [vmem:[%s8] sm:$0xf]
    %v2729 = vperm.slane %v2727, 0
    %v2730 = vperm.slane %v2727, 1
    %v2731 = vperm.slane %v2727, 2
    %v2732 = vperm.slane %v2727, 3
    %v2737 = vmul.f32 %v2723, %v2729
    %v2738 = vmul.f32 %v2724, %v2730
    %v2739 = vmul.f32 %v2725, %v2731
    %v2740 = vmul.f32 %v2726, %v2732
    %v2741 = vsel %vm194, %v2737, 0.0
    %v2742 = vsel %vm194, %v2738, 0.0
    %v2743 = vadd.f32 %v2741, %v2742
    %v2744 = vsel %vm194, %v2739, 0.0
    %v2745 = vadd.f32 %v2743, %v2744
    %v2746 = vsel %vm194, %v2740, 0.0
    %v2747 = vadd.f32 %v2745, %v2746
    %2748 = vadd.xlane.f32.xlu0 %v2747
    %v2749 = vpop.xlane.xlu0 %2748
    %s2750 = sld [smem:[#allocation2]]
    %v2751 = vstv %s2750
    %v2752 = vadd.f32 %v2749, %v2751
    %v2754 = vperm.slane %v2752, %v175
    %vm2756 = vcmask 8192
    %2757 = vst.msk [vmem:[#allocation11] sm:$0x1] %vm2756, %v2754
    // Predicated region
    $region58: #{discriminator_forward.1} parent=1 // pred_check
      _
    $region59: #{discriminator_forward.1} parent=1 // pred_check_branch
      %2759 = sbr.rel (0) target = $region61
    $region60: #{discriminator_forward.1} parent=1 // pred_region
      %2761 = vsyncadd [#allocation5], 0
      %s2763 = sshll.u32 [#allocation11], 4
      %s2764 = int_to_ptr.vmem [resolvable:$true] %s2763
      %s2765 = sshll.u32 %s10, 4
      %s2766 = int_to_ptr.hbm [resolvable:$true] %s2765
      %2768 = dma.vmem_to_hbm [thread:$0]  %s2764, 16, %s2766, [#allocation5]
    $region61: #{discriminator_forward.1} parent=1 // pred_fallthru
      _
    // Predicated region
    $region62: #{discriminator_forward.1} parent=1 // pred_check
      _
    $region63: #{discriminator_forward.1} parent=1 // pred_check_branch
      %2770 = sbr.rel (0) target = $region65
    $region64: #{discriminator_forward.1} parent=1 // pred_region
      %2772 = dma.done [#allocation5], 16
    $region65: #{discriminator_forward.1} parent=1 // pred_fallthru
      _
    %2773 = vsyncpa [#allocation4], 1
    %2774 = vsyncpa [#allocation7], 1
    %2775 = vsyncpa [#allocation10], 1
    %2776 = vsyncpa [#allocation5], 1

</llo_original>
